<compile_context>
chip_gen: v7x
topology: tpu7x:2x2x1
jax: 0.10.0
libtpu: 0.0.40
codegen_flags: <defaults>
</compile_context>

<pallas_src>
import jax
import jax.numpy as jnp
from jax.experimental import pallas as pl
from jax.experimental.pallas import tpu as pltpu


def _round_up(n, m):
    return ((n + m - 1) // m) * m


def _pick_fold_factor(B, nfeat):
    """Lane-fold factor F (power of two).

    F*16 is the folded hidden width: F=8 -> 128 lanes (fills a v5e MXU / one
    vreg row), F=16 -> 256 lanes (fills the v6e/v7x MXU).  F must divide B so
    the fold is a free row-major reshape (no HBM pad/copy); otherwise halve it.
    """
    try:
        kind = jax.devices()[0].device_kind.lower()
    except Exception:
        kind = ""
    cap = 8 if any(g in kind for g in ("v2", "v3", "v4", "v5")) else 16
    # Folded W1 ([F*nfeat, F*16]) stays resident in VMEM; keep it modest.
    while cap > 1 and (cap * nfeat) * (cap * 16) * 4 > (8 << 20):
        cap //= 2
    f = cap
    while f > 1 and B % f:
        f //= 2
    return f


def _fold_params(params, F):
    """Expand [in,out] weights to block-diagonal kron(I_F, W); tile biases F times."""
    def blk(w):
        return jnp.kron(jnp.eye(F, dtype=w.dtype), w)
    return {
        "w1": blk(params["w1"]), "b1": jnp.tile(params["b1"], (1, F)),
        "w2": blk(params["w2"]), "b2": jnp.tile(params["b2"], (1, F)),
        "w3": blk(params["w3"]), "b3": jnp.tile(params["b3"], (1, F)),
    }


def _mlp_kernel(x_ref, w1_ref, b1_ref, w2_ref, b2_ref, w3_ref, b3_ref, o_ref):
    # Fused 3-layer MLP: matmuls on the MXU, bias/ReLU on the VPU, tanh on the EUP.
    hp = jax.lax.Precision.HIGHEST
    x = x_ref[...]
    h1 = jnp.dot(x, w1_ref[...], precision=hp, preferred_element_type=jnp.float32)
    h1 = jnp.maximum(h1 + b1_ref[...], 0.0)
    h2 = jnp.dot(h1, w2_ref[...], precision=hp, preferred_element_type=jnp.float32)
    h2 = jnp.maximum(h2 + b2_ref[...], 0.0)
    z = jnp.dot(h2, w3_ref[...], precision=hp, preferred_element_type=jnp.float32)
    z = z + b3_ref[...]
    # sigmoid(z) == 0.5 * (tanh(z / 2) + 1)  -- exact, EUP-friendly, no divide.
    o_ref[...] = (0.5 * jnp.tanh(0.5 * z) + 0.5).astype(o_ref.dtype)


def _run_mlp(xf, fp, block_rows):
    """Single fused pallas_call over (possibly lane-folded) activations.

    xf: [Bf, kin] float32; fp: dict of [in,out] weights and [1,out] biases.
    Returns [Bf, kout] float32.
    """
    Bf, kin = xf.shape
    k1 = fp["w1"].shape[1]
    k2 = fp["w2"].shape[1]
    k3 = fp["w3"].shape[1]

    if Bf <= 8:
        bb = Bf                                   # block == full dim: no 8-align needed
    else:
        bb = _round_up(min(block_rows, Bf), 8)
        # Keep the double-buffered x tile <= ~8 MiB: safe inside every
        # generation's scoped-VMEM default (v7x: 32 MiB of 64 MiB physical).
        max_rows = max(8, ((8 << 20) // (kin * 4)) // 8 * 8)
        bb = min(bb, max_rows)
        # Prefer an even number of batch tiles so both v7x TensorCores get
        # balanced work on the "parallel" axis (grid of 1 or 3 leaves a TC idle).
        g = pl.cdiv(Bf, bb)
        if g % 2 == 1:
            bb = _round_up(pl.cdiv(Bf, g + 1), 8)
    grid_b = pl.cdiv(Bf, bb)                      # partial final block handled by Pallas

    weight_bytes = 4 * (kin * k1 + k1 + k1 * k2 + k2 + k2 * k3 + k3)
    cost = pl.CostEstimate(
        flops=2 * Bf * (kin * k1 + k1 * k2 + k2 * k3),
        transcendentals=Bf * k3,
        bytes_accessed=4 * Bf * (kin + k3) + weight_bytes,
    )

    return pl.pallas_call(
        _mlp_kernel,
        out_shape=jax.ShapeDtypeStruct((Bf, k3), jnp.float32),
        grid_spec=pl.GridSpec(
            grid=(grid_b,),
            in_specs=[
                # activations: tile over (folded) batch rows, full feature width.
                pl.BlockSpec((bb, kin), lambda i: (i, 0)),
                # parameters: full arrays, constant block index -> resident, DMA'd once.
                pl.BlockSpec((kin, k1), lambda i: (0, 0)),
                pl.BlockSpec((1, k1), lambda i: (0, 0)),
                pl.BlockSpec((k1, k2), lambda i: (0, 0)),
                pl.BlockSpec((1, k2), lambda i: (0, 0)),
                pl.BlockSpec((k2, k3), lambda i: (0, 0)),
                pl.BlockSpec((1, k3), lambda i: (0, 0)),
            ],
            out_specs=pl.BlockSpec((bb, k3), lambda i: (i, 0)),
        ),
        compiler_params=pltpu.CompilerParams(dimension_semantics=("parallel",)),
        cost_estimate=cost,
    )(xf, fp["w1"], fp["b1"], fp["w2"], fp["b2"], fp["w3"], fp["b3"])


def mlp_classifica_forward(x, params, *, block_batch=4096, fold=None):
    """Eval-mode forward pass of MLPclassifica.

    x: [B, nfeat] float32
    params: dict with w1 [nfeat,16], b1 [1,16], w2 [16,10], b2 [1,10],
            w3 [10,2], b3 [1,2]  (weights already transposed to [in, out]).
    Returns (output [B, 2], loss=0.0).
    """
    B, nfeat = x.shape
    F = fold if fold is not None else _pick_fold_factor(B, nfeat)

    if F > 1:
        fp = _fold_params(params, F)
        xf = x.reshape(B // F, F * nfeat)        # free row-major refold, no HBM copy
    else:
        fp = dict(params)
        xf = x

    out = _run_mlp(xf, fp, max(8, block_batch // F))
    out = out.reshape(B, 2)                      # free row-major unfold

    loss = jnp.float32(0.0)                      # eval mode: no MMD loss
    return out, loss


def init_params(nfeat, key):
    """Deterministic PyTorch-Linear-style init (uniform(-1/sqrt(fan_in), +))."""
    ks = jax.random.split(key, 6)

    def linear(kw, kb, fan_in, fan_out):
        bound = 1.0 / jnp.sqrt(jnp.float32(fan_in))
        w = jax.random.uniform(kw, (fan_in, fan_out), jnp.float32, -bound, bound)
        b = jax.random.uniform(kb, (1, fan_out), jnp.float32, -bound, bound)
        return w, b

    w1, b1 = linear(ks[0], ks[1], nfeat, 16)
    w2, b2 = linear(ks[2], ks[3], 16, 10)
    w3, b3 = linear(ks[4], ks[5], 10, 2)
    return {"w1": w1, "b1": b1, "w2": w2, "b2": b2, "w3": w3, "b3": b3}


def _reference_forward(x, p):
    hp = jax.lax.Precision.HIGHEST
    h1 = jax.nn.relu(jnp.dot(x, p["w1"], precision=hp) + p["b1"])
    h2 = jax.nn.relu(jnp.dot(h1, p["w2"], precision=hp) + p["b2"])
    return jax.nn.sigmoid(jnp.dot(h2, p["w3"], precision=hp) + p["b3"])


if __name__ == "__main__":
    key = jax.random.PRNGKey(0)
    k_x1, k_x2, k_x3, k_p = jax.random.split(key, 4)

    nfeat = 32
    params = init_params(nfeat, k_p)

    # Case 1: tiny ragged batch (B=10 -> F=2), single sub-8-row block.
    B1 = 10
    x1 = jax.random.normal(k_x1, (B1, nfeat), jnp.float32)
    out1, loss1 = mlp_classifica_forward(x1, params)
    out1 = jax.block_until_ready(out1)
    ref1 = _reference_forward(x1, params)
    assert out1.shape == (B1, 2)
    assert jnp.allclose(out1, ref1, atol=1e-4, rtol=1e-4), "mismatch (small case)"
    assert float(loss1) == 0.0

    # Case 2: power-of-two batch -> full fold (F=16 on v6e/v7x, F=8 on v5e), even grid.
    B2 = 2048
    x2 = jax.random.normal(k_x2, (B2, nfeat), jnp.float32)
    out2, _ = mlp_classifica_forward(x2, params)
    out2 = jax.block_until_ready(out2)
    ref2 = _reference_forward(x2, params)
    assert out2.shape == (B2, 2)
    assert jnp.allclose(out2, ref2, atol=1e-4, rtol=1e-4), "mismatch (pow2 case)"

    # Case 3: ragged batch (B=2500 -> F=4), partial final block, no HBM pad/slice.
    B3 = 2500
    x3 = jax.random.normal(k_x3, (B3, nfeat), jnp.float32)
    out3, _ = mlp_classifica_forward(x3, params)
    out3 = jax.block_until_ready(out3)
    ref3 = _reference_forward(x3, params)
    assert out3.shape == (B3, 2)
    assert jnp.allclose(out3, ref3, atol=1e-4, rtol=1e-4), "mismatch (ragged case)"

    print("KERNEL_OK")
</pallas_src>

<mosaic_0001>
module attributes {stable_mosaic.version = 11 : i64} {
  func.func @_mlp_kernel(%arg0: i32, %arg1: memref<5x64xf32, #tpu.memory_space<vmem>>, %arg2: memref<64x32xf32, #tpu.memory_space<vmem>>, %arg3: memref<1x32xf32, #tpu.memory_space<vmem>>, %arg4: memref<32x20xf32, #tpu.memory_space<vmem>>, %arg5: memref<1x20xf32, #tpu.memory_space<vmem>>, %arg6: memref<20x4xf32, #tpu.memory_space<vmem>>, %arg7: memref<1x4xf32, #tpu.memory_space<vmem>>, %arg8: memref<5x4xf32, #tpu.memory_space<vmem>>) attributes {dimension_semantics = [#tpu.dimension_semantics<parallel>], iteration_bounds = array<i64: 1>, scalar_prefetch = 0 : i64, scratch_operands = 0 : i64, tpu.core_type = #tpu.core_type<tc>, window_params = [{transform_indices = @transform_0, window_bounds = array<i64: 5, 64>}, {pipeline_mode = #tpu.pipeline_mode<synchronous>, transform_indices = @transform_1, window_bounds = array<i64: 64, 32>}, {pipeline_mode = #tpu.pipeline_mode<synchronous>, transform_indices = @transform_2, window_bounds = array<i64: 1, 32>}, {pipeline_mode = #tpu.pipeline_mode<synchronous>, transform_indices = @transform_3, window_bounds = array<i64: 32, 20>}, {pipeline_mode = #tpu.pipeline_mode<synchronous>, transform_indices = @transform_4, window_bounds = array<i64: 1, 20>}, {pipeline_mode = #tpu.pipeline_mode<synchronous>, transform_indices = @transform_5, window_bounds = array<i64: 20, 4>}, {pipeline_mode = #tpu.pipeline_mode<synchronous>, transform_indices = @transform_6, window_bounds = array<i64: 1, 4>}, {transform_indices = @transform_7, window_bounds = array<i64: 5, 4>}]} {
    %c0 = arith.constant 0 : index
    %c0_0 = arith.constant 0 : index
    %0 = vector.load %arg1[%c0, %c0_0] : memref<5x64xf32, #tpu.memory_space<vmem>>, vector<5x64xf32>
    %c0_1 = arith.constant 0 : index
    %c0_2 = arith.constant 0 : index
    %1 = vector.load %arg2[%c0_1, %c0_2] : memref<64x32xf32, #tpu.memory_space<vmem>>, vector<64x32xf32>
    %cst = arith.constant dense<0.000000e+00> : vector<5x32xf32>
    %2 = tpu.matmul %0, %1, %cst {dimension_numbers = #tpu.dot_dimension_numbers<[1], [0], [0], [1], [0, 0, 1, 1], [], []>, precision = #tpu.contract_precision<fp32>} : vector<5x64xf32>, vector<64x32xf32>, vector<5x32xf32> -> vector<5x32xf32>
    %c0_3 = arith.constant 0 : index
    %c0_4 = arith.constant 0 : index
    %3 = vector.load %arg3[%c0_3, %c0_4] : memref<1x32xf32, #tpu.memory_space<vmem>>, vector<1x32xf32>
    %4 = vector.broadcast %3 : vector<1x32xf32> to vector<5x32xf32>
    %5 = arith.addf %2, %4 : vector<5x32xf32>
    %cst_5 = arith.constant 0.000000e+00 : f32
    %6 = vector.broadcast %cst_5 : f32 to vector<5x32xf32>
    %7 = arith.maximumf %5, %6 : vector<5x32xf32>
    %c0_6 = arith.constant 0 : index
    %c0_7 = arith.constant 0 : index
    %8 = vector.load %arg4[%c0_6, %c0_7] : memref<32x20xf32, #tpu.memory_space<vmem>>, vector<32x20xf32>
    %cst_8 = arith.constant dense<0.000000e+00> : vector<5x20xf32>
    %9 = tpu.matmul %7, %8, %cst_8 {dimension_numbers = #tpu.dot_dimension_numbers<[1], [0], [0], [1], [0, 0, 1, 1], [], []>, precision = #tpu.contract_precision<fp32>} : vector<5x32xf32>, vector<32x20xf32>, vector<5x20xf32> -> vector<5x20xf32>
    %c0_9 = arith.constant 0 : index
    %c0_10 = arith.constant 0 : index
    %10 = vector.load %arg5[%c0_9, %c0_10] : memref<1x20xf32, #tpu.memory_space<vmem>>, vector<1x20xf32>
    %11 = vector.broadcast %10 : vector<1x20xf32> to vector<5x20xf32>
    %12 = arith.addf %9, %11 : vector<5x20xf32>
    %cst_11 = arith.constant 0.000000e+00 : f32
    %13 = vector.broadcast %cst_11 : f32 to vector<5x20xf32>
    %14 = arith.maximumf %12, %13 : vector<5x20xf32>
    %c0_12 = arith.constant 0 : index
    %c0_13 = arith.constant 0 : index
    %15 = vector.load %arg6[%c0_12, %c0_13] : memref<20x4xf32, #tpu.memory_space<vmem>>, vector<20x4xf32>
    %cst_14 = arith.constant dense<0.000000e+00> : vector<5x4xf32>
    %16 = tpu.matmul %14, %15, %cst_14 {dimension_numbers = #tpu.dot_dimension_numbers<[1], [0], [0], [1], [0, 0, 1, 1], [], []>, precision = #tpu.contract_precision<fp32>} : vector<5x20xf32>, vector<20x4xf32>, vector<5x4xf32> -> vector<5x4xf32>
    %c0_15 = arith.constant 0 : index
    %c0_16 = arith.constant 0 : index
    %17 = vector.load %arg7[%c0_15, %c0_16] : memref<1x4xf32, #tpu.memory_space<vmem>>, vector<1x4xf32>
    %18 = vector.broadcast %17 : vector<1x4xf32> to vector<5x4xf32>
    %19 = arith.addf %16, %18 : vector<5x4xf32>
    %cst_17 = arith.constant 5.000000e-01 : f32
    %20 = vector.broadcast %cst_17 : f32 to vector<5x4xf32>
    %21 = arith.mulf %20, %19 : vector<5x4xf32>
    %22 = math.tanh %21 : vector<5x4xf32>
    %cst_18 = arith.constant 5.000000e-01 : f32
    %23 = vector.broadcast %cst_18 : f32 to vector<5x4xf32>
    %24 = arith.mulf %23, %22 : vector<5x4xf32>
    %cst_19 = arith.constant 5.000000e-01 : f32
    %25 = vector.broadcast %cst_19 : f32 to vector<5x4xf32>
    %26 = arith.addf %24, %25 : vector<5x4xf32>
    %c0_20 = arith.constant 0 : index
    %c0_21 = arith.constant 0 : index
    %27 = vector.load %arg8[%c0_20, %c0_21] : memref<5x4xf32, #tpu.memory_space<vmem>>, vector<5x4xf32>
    tpu.vector_store %arg8[%c0_20, %c0_21], %26 {strides = array<i32>} : memref<5x4xf32, #tpu.memory_space<vmem>>, vector<5x4xf32>,
    return
  }
  func.func @transform_0(%arg0: i32) -> (i32, i32) {
    %c0_i32 = arith.constant 0 : i32
    %c0_i32_0 = arith.constant 0 : i32
    return %arg0, %c0_i32 : i32, i32
  }
  func.func @transform_1(%arg0: i32) -> (i32, i32) {
    %c0_i32 = arith.constant 0 : i32
    %c0_i32_0 = arith.constant 0 : i32
    %c0_i32_1 = arith.constant 0 : i32
    return %c0_i32, %c0_i32_0 : i32, i32
  }
  func.func @transform_2(%arg0: i32) -> (i32, i32) {
    %c0_i32 = arith.constant 0 : i32
    %c0_i32_0 = arith.constant 0 : i32
    %c0_i32_1 = arith.constant 0 : i32
    return %c0_i32, %c0_i32_0 : i32, i32
  }
  func.func @transform_3(%arg0: i32) -> (i32, i32) {
    %c0_i32 = arith.constant 0 : i32
    %c0_i32_0 = arith.constant 0 : i32
    %c0_i32_1 = arith.constant 0 : i32
    return %c0_i32, %c0_i32_0 : i32, i32
  }
  func.func @transform_4(%arg0: i32) -> (i32, i32) {
    %c0_i32 = arith.constant 0 : i32
    %c0_i32_0 = arith.constant 0 : i32
    %c0_i32_1 = arith.constant 0 : i32
    return %c0_i32, %c0_i32_0 : i32, i32
  }
  func.func @transform_5(%arg0: i32) -> (i32, i32) {
    %c0_i32 = arith.constant 0 : i32
    %c0_i32_0 = arith.constant 0 : i32
    %c0_i32_1 = arith.constant 0 : i32
    return %c0_i32, %c0_i32_0 : i32, i32
  }
  func.func @transform_6(%arg0: i32) -> (i32, i32) {
    %c0_i32 = arith.constant 0 : i32
    %c0_i32_0 = arith.constant 0 : i32
    %c0_i32_1 = arith.constant 0 : i32
    return %c0_i32, %c0_i32_0 : i32, i32
  }
  func.func @transform_7(%arg0: i32) -> (i32, i32) {
    %c0_i32 = arith.constant 0 : i32
    %c0_i32_0 = arith.constant 0 : i32
    return %arg0, %c0_i32 : i32, i32
  }
}

</mosaic_0001>

<llo_original>
// kernel: tpu_custom_call.1
$region0: #{tpu_custom_call.1}
  #allocation0 [shape = 'u32[]', space=smem, size = 0x4, offset = 0x4, fixed_abs, tag = 'smem constant byte address 0x4 - core index']
  #allocation1 [shape = 'u32[144,128]{1,0:T(1,128)}', space=vmem, size = 0x12000, scoped, tag = 'internal scratch']
  %s0 = inlined_call_operand.vmem [shape: f32[5,64], index: 0, kind: input, shape index: {}]
  %s1 = inlined_call_operand.vmem [shape: f32[64,32], index: 1, kind: input, shape index: {}]
  %s2 = inlined_call_operand.vmem [shape: f32[1,32], index: 2, kind: input, shape index: {}]
  %s3 = inlined_call_operand.vmem [shape: f32[32,20], index: 3, kind: input, shape index: {}]
  %s4 = inlined_call_operand.vmem [shape: f32[1,20], index: 4, kind: input, shape index: {}]
  %s5 = inlined_call_operand.vmem [shape: f32[20,4], index: 5, kind: input, shape index: {}]
  %s6 = inlined_call_operand.vmem [shape: f32[1,4], index: 6, kind: input, shape index: {}]
  %s7 = inlined_call_operand.vmem [shape: f32[5,4], index: 7, kind: output, shape index: {}]
  %s8 = sld [smem:[#allocation0]]
  $region38: #{tpu_custom_call.1} parent=0
    _
  %s10 = ssub.s32 1, %s8
  %s11 = scalar_select 0, %s10, %s8
  // Predicated region
  $region2: #{tpu_custom_call.1} parent=0 // pred_check
    _
  $region3: #{tpu_custom_call.1} parent=0 // pred_check_branch
    %13 = sbr.rel (0) target = $region5
  $region4: #{tpu_custom_call.1} parent=0 // pred_region
    _
  $region5: #{tpu_custom_call.1} parent=0 // pred_fallthru
    _
  // Predicated region
  $region6: #{tpu_custom_call.1} parent=0 // pred_check
    _
  $region7: #{tpu_custom_call.1} parent=0 // pred_check_branch
    %15 = sbr.rel (0) target = $region9
  $region8: #{tpu_custom_call.1} parent=0 // pred_region
    _
  $region9: #{tpu_custom_call.1} parent=0 // pred_fallthru
    _
  // Predicated region
  $region10: #{tpu_custom_call.1} parent=0 // pred_check
    _
  $region11: #{tpu_custom_call.1} parent=0 // pred_check_branch
    %17 = sbr.rel (0) target = $region13
  $region12: #{tpu_custom_call.1} parent=0 // pred_region
    _
  $region13: #{tpu_custom_call.1} parent=0 // pred_fallthru
    _
  // Predicated region
  $region14: #{tpu_custom_call.1} parent=0 // pred_check
    _
  $region15: #{tpu_custom_call.1} parent=0 // pred_check_branch
    %19 = sbr.rel (0) target = $region17
  $region16: #{tpu_custom_call.1} parent=0 // pred_region
    _
  $region17: #{tpu_custom_call.1} parent=0 // pred_fallthru
    _
  // Predicated region
  $region18: #{tpu_custom_call.1} parent=0 // pred_check
    _
  $region19: #{tpu_custom_call.1} parent=0 // pred_check_branch
    %21 = sbr.rel (0) target = $region21
  $region20: #{tpu_custom_call.1} parent=0 // pred_region
    _
  $region21: #{tpu_custom_call.1} parent=0 // pred_fallthru
    _
  // Predicated region
  $region22: #{tpu_custom_call.1} parent=0 // pred_check
    _
  $region23: #{tpu_custom_call.1} parent=0 // pred_check_branch
    %23 = sbr.rel (0) target = $region25
  $region24: #{tpu_custom_call.1} parent=0 // pred_region
    _
  $region25: #{tpu_custom_call.1} parent=0 // pred_fallthru
    _
  // Predicated region
  $region26: #{tpu_custom_call.1} parent=0 // pred_check
    _
  $region27: #{tpu_custom_call.1} parent=0 // pred_check_branch
    %25 = sbr.rel (0) target = $region29
  $region28: #{tpu_custom_call.1} parent=0 // pred_region
    _
  $region29: #{tpu_custom_call.1} parent=0 // pred_fallthru
    _
  %v26 = vld [vmem:[%s0] sm:$0x1f]
  %v27 = vld [vmem:[%s1] sm:$0xff]
  %v28 = vld [vmem:[%s1 + $0x8] sm:$0xff]
  %v29 = vld [vmem:[%s1 + $0x10] sm:$0xff]
  %v30 = vld [vmem:[%s1 + $0x18] sm:$0xff]
  %v31 = vld [vmem:[%s1 + $0x20] sm:$0xff]
  %v32 = vld [vmem:[%s1 + $0x28] sm:$0xff]
  %v33 = vld [vmem:[%s1 + $0x30] sm:$0xff]
  %v34 = vld [vmem:[%s1 + $0x38] sm:$0xff]
  %v35 = vld [vmem:[%s2] sm:$0x1]
  %v37 = vlaneseq
  %v38 = vshrl.u32 %v37, 7
  %v39 = vsub.s32 0, %v38
  %v40 = vrot.slane %v35, %v39
  %vm42 = vcmask 523264
  %v44 = vsel %vm42, %v26, 0
  %46 = vmatprep.subr.mxu0 0.0
  %v47 = vand.u32 %v27, 4294901760
  %48 = vmatpush1.msra.mxu0 %v47
  %49 = vmatprep.subr.mxu0 0.0
  %v50 = vand.u32 %v28, 4294901760
  %51 = vmatpush1.msra.mxu0 %v50
  %52 = vmatprep.subr.mxu0 0.0
  %v53 = vand.u32 %v29, 4294901760
  %54 = vmatpush1.msra.mxu0 %v53
  %55 = vmatprep.subr.mxu0 0.0
  %v56 = vand.u32 %v30, 4294901760
  %57 = vmatpush1.msra.mxu0 %v56
  %58 = vmatprep.subr.mxu0 0.0
  %v59 = vand.u32 %v31, 4294901760
  %60 = vmatpush1.msra.mxu0 %v59
  %61 = vmatprep.subr.mxu0 0.0
  %v62 = vand.u32 %v32, 4294901760
  %63 = vmatpush1.msra.mxu0 %v62
  %64 = vmatprep.subr.mxu0 0.0
  %v65 = vand.u32 %v33, 4294901760
  %66 = vmatpush1.msra.mxu0 %v65
  %67 = vmatprep.subr.mxu0 0.0
  %v68 = vand.u32 %v34, 4294901760
  %69 = vmatpush1.msra.mxu0 %v68
  %70 = vmatprep.subr.mxu0 0.0
  %71 = vmatpush1.msra.mxu0 0.0
  %72 = vmatprep.subr.mxu0 0.0
  %73 = vmatpush1.msra.mxu0 0.0
  %74 = vmatprep.subr.mxu0 0.0
  %75 = vmatpush1.msra.mxu0 0.0
  %76 = vmatprep.subr.mxu0 0.0
  %77 = vmatpush1.msra.mxu0 0.0
  %78 = vmatprep.subr.mxu0 0.0
  %79 = vmatpush1.msra.mxu0 0.0
  %80 = vmatprep.subr.mxu0 0.0
  %81 = vmatpush1.msra.mxu0 0.0
  %82 = vmatprep.subr.mxu0 0.0
  %83 = vmatpush1.msra.mxu0 0.0
  %84 = vmatprep.subr.mxu0 0.0
  %85 = vmatpush1.msra.mxu0 0.0
  %86 = vmatprep.subr.mxu0 0.0
  %87 = vmatpush1.msra.mxu0 0.0
  %88 = vmatprep.subr.mxu0 0.0
  %89 = vmatpush1.msra.mxu0 0.0
  %90 = vmatprep.subr.mxu0 0.0
  %91 = vmatpush1.msra.mxu0 0.0
  %92 = vmatprep.subr.mxu0 0.0
  %93 = vmatpush1.msra.mxu0 0.0
  %94 = vmatprep.subr.mxu0 0.0
  %95 = vmatpush1.msra.mxu0 0.0
  %96 = vmatprep.subr.mxu0 0.0
  %97 = vmatpush1.msra.mxu0 0.0
  %98 = vmatprep.subr.mxu0 0.0
  %99 = vmatpush1.msra.mxu0 0.0
  %100 = vmatprep.subr.mxu0 0.0
  %101 = vmatpush1.msra.mxu0 0.0
  %102 = vmatprep.subr.mxu0 0.0
  %103 = vmatpush1.msra.mxu0 0.0
  %104 = vmatprep.subr.mxu0 0.0
  %105 = vmatpush1.msra.mxu0 0.0
  %106 = vmatprep.subr.mxu0 0.0
  %107 = vmatpush1.msra.mxu0 0.0
  %108 = vmatprep.subr.mxu0 0.0
  %109 = vmatpush1.msra.mxu0 0.0
  %110 = vmatprep.subr.mxu0 0.0
  %111 = vmatpush1.msra.mxu0 0.0
  %112 = vmatprep.subr.mxu0 0.0
  %113 = vmatpush1.msra.mxu0 0.0
  %114 = vmatprep.subr.mxu0 0.0
  %115 = vmatpush1.msra.mxu0 0.0
  %116 = vmatprep.subr.mxu0 0.0
  %117 = vmatpush1.msra.mxu0 0.0
  %118 = vmatprep.mubr.f32.mxu0 0.0
  %v119 = vand.u32 %v44, 4294901760
  %v120 = vsub.f32 %v44, %v119
  %v121 = vand.u32 %v120, 4294901760
  %v122 = vsub.f32 %v120, %v121
  %v123 = vand.u32 %v122, 4294901760
  %124 = vmatmul.mubr.f32.gmra.mrb[0].mxu0 %v123
  %v125 = vpop.f32.mrb[0].mxu0
  %v126 = vadd.f32 %v40, %v125
  %v127 = vpop.f32.mrb[0].mxu0
  %128 = vdwg.mxu0
  %129 = vmatprep.subr.mxu0 0.0
  %v130 = vand.u32 %v27, 4294901760
  %v131 = vsub.f32 %v27, %v130
  %v132 = vand.u32 %v131, 4294901760
  %v133 = vsub.f32 %v131, %v132
  %v134 = vand.u32 %v133, 4294901760
  %135 = vmatpush1.msra.mxu0 %v134
  %136 = vmatprep.subr.mxu0 0.0
  %v137 = vand.u32 %v28, 4294901760
  %v138 = vsub.f32 %v28, %v137
  %v139 = vand.u32 %v138, 4294901760
  %v140 = vsub.f32 %v138, %v139
  %v141 = vand.u32 %v140, 4294901760
  %142 = vmatpush1.msra.mxu0 %v141
  %143 = vmatprep.subr.mxu0 0.0
  %v144 = vand.u32 %v29, 4294901760
  %v145 = vsub.f32 %v29, %v144
  %v146 = vand.u32 %v145, 4294901760
  %v147 = vsub.f32 %v145, %v146
  %v148 = vand.u32 %v147, 4294901760
  %149 = vmatpush1.msra.mxu0 %v148
  %150 = vmatprep.subr.mxu0 0.0
  %v151 = vand.u32 %v30, 4294901760
  %v152 = vsub.f32 %v30, %v151
  %v153 = vand.u32 %v152, 4294901760
  %v154 = vsub.f32 %v152, %v153
  %v155 = vand.u32 %v154, 4294901760
  %156 = vmatpush1.msra.mxu0 %v155
  %157 = vmatprep.subr.mxu0 0.0
  %v158 = vand.u32 %v31, 4294901760
  %v159 = vsub.f32 %v31, %v158
  %v160 = vand.u32 %v159, 4294901760
  %v161 = vsub.f32 %v159, %v160
  %v162 = vand.u32 %v161, 4294901760
  %163 = vmatpush1.msra.mxu0 %v162
  %164 = vmatprep.subr.mxu0 0.0
  %v165 = vand.u32 %v32, 4294901760
  %v166 = vsub.f32 %v32, %v165
  %v167 = vand.u32 %v166, 4294901760
  %v168 = vsub.f32 %v166, %v167
  %v169 = vand.u32 %v168, 4294901760
  %170 = vmatpush1.msra.mxu0 %v169
  %171 = vmatprep.subr.mxu0 0.0
  %v172 = vand.u32 %v33, 4294901760
  %v173 = vsub.f32 %v33, %v172
  %v174 = vand.u32 %v173, 4294901760
  %v175 = vsub.f32 %v173, %v174
  %v176 = vand.u32 %v175, 4294901760
  %177 = vmatpush1.msra.mxu0 %v176
  %178 = vmatprep.subr.mxu0 0.0
  %v179 = vand.u32 %v34, 4294901760
  %v180 = vsub.f32 %v34, %v179
  %v181 = vand.u32 %v180, 4294901760
  %v182 = vsub.f32 %v180, %v181
  %v183 = vand.u32 %v182, 4294901760
  %184 = vmatpush1.msra.mxu0 %v183
  %185 = vmatprep.subr.mxu0 0.0
  %186 = vmatpush1.msra.mxu0 0.0
  %187 = vmatprep.subr.mxu0 0.0
  %188 = vmatpush1.msra.mxu0 0.0
  %189 = vmatprep.subr.mxu0 0.0
  %190 = vmatpush1.msra.mxu0 0.0
  %191 = vmatprep.subr.mxu0 0.0
  %192 = vmatpush1.msra.mxu0 0.0
  %193 = vmatprep.subr.mxu0 0.0
  %194 = vmatpush1.msra.mxu0 0.0
  %195 = vmatprep.subr.mxu0 0.0
  %196 = vmatpush1.msra.mxu0 0.0
  %197 = vmatprep.subr.mxu0 0.0
  %198 = vmatpush1.msra.mxu0 0.0
  %199 = vmatprep.subr.mxu0 0.0
  %200 = vmatpush1.msra.mxu0 0.0
  %201 = vmatprep.subr.mxu0 0.0
  %202 = vmatpush1.msra.mxu0 0.0
  %203 = vmatprep.subr.mxu0 0.0
  %204 = vmatpush1.msra.mxu0 0.0
  %205 = vmatprep.subr.mxu0 0.0
  %206 = vmatpush1.msra.mxu0 0.0
  %207 = vmatprep.subr.mxu0 0.0
  %208 = vmatpush1.msra.mxu0 0.0
  %209 = vmatprep.subr.mxu0 0.0
  %210 = vmatpush1.msra.mxu0 0.0
  %211 = vmatprep.subr.mxu0 0.0
  %212 = vmatpush1.msra.mxu0 0.0
  %213 = vmatprep.subr.mxu0 0.0
  %214 = vmatpush1.msra.mxu0 0.0
  %215 = vmatprep.subr.mxu0 0.0
  %216 = vmatpush1.msra.mxu0 0.0
  %217 = vmatprep.subr.mxu0 0.0
  %218 = vmatpush1.msra.mxu0 0.0
  %219 = vmatprep.subr.mxu0 0.0
  %220 = vmatpush1.msra.mxu0 0.0
  %221 = vmatprep.subr.mxu0 0.0
  %222 = vmatpush1.msra.mxu0 0.0
  %223 = vmatprep.subr.mxu0 0.0
  %224 = vmatpush1.msra.mxu0 0.0
  %225 = vmatprep.subr.mxu0 0.0
  %226 = vmatpush1.msra.mxu0 0.0
  %227 = vmatprep.subr.mxu0 0.0
  %228 = vmatpush1.msra.mxu0 0.0
  %229 = vmatprep.subr.mxu0 0.0
  %230 = vmatpush1.msra.mxu0 0.0
  %231 = vmatprep.subr.mxu0 0.0
  %232 = vmatpush1.msra.mxu0 0.0
  %233 = vmatprep.mubr.f32.mxu0 0.0
  %v234 = vand.u32 %v44, 4294901760
  %235 = vmatmul.mubr.f32.gmra.mrb[0].mxu0 %v234
  %v236 = vpop.f32.mrb[0].mxu0
  %v237 = vadd.f32 %v126, %v236
  %v238 = vpop.f32.mrb[0].mxu0
  %239 = vdwg.mxu0
  %240 = vmatprep.subr.mxu0 0.0
  %v241 = vand.u32 %v27, 4294901760
  %v242 = vsub.f32 %v27, %v241
  %243 = vmatpush1.msra.mxu0 %v242
  %244 = vmatprep.subr.mxu0 0.0
  %v245 = vand.u32 %v28, 4294901760
  %v246 = vsub.f32 %v28, %v245
  %247 = vmatpush1.msra.mxu0 %v246
  %248 = vmatprep.subr.mxu0 0.0
  %v249 = vand.u32 %v29, 4294901760
  %v250 = vsub.f32 %v29, %v249
  %251 = vmatpush1.msra.mxu0 %v250
  %252 = vmatprep.subr.mxu0 0.0
  %v253 = vand.u32 %v30, 4294901760
  %v254 = vsub.f32 %v30, %v253
  %255 = vmatpush1.msra.mxu0 %v254
  %256 = vmatprep.subr.mxu0 0.0
  %v257 = vand.u32 %v31, 4294901760
  %v258 = vsub.f32 %v31, %v257
  %259 = vmatpush1.msra.mxu0 %v258
  %260 = vmatprep.subr.mxu0 0.0
  %v261 = vand.u32 %v32, 4294901760
  %v262 = vsub.f32 %v32, %v261
  %263 = vmatpush1.msra.mxu0 %v262
  %264 = vmatprep.subr.mxu0 0.0
  %v265 = vand.u32 %v33, 4294901760
  %v266 = vsub.f32 %v33, %v265
  %267 = vmatpush1.msra.mxu0 %v266
  %268 = vmatprep.subr.mxu0 0.0
  %v269 = vand.u32 %v34, 4294901760
  %v270 = vsub.f32 %v34, %v269
  %271 = vmatpush1.msra.mxu0 %v270
  %272 = vmatprep.subr.mxu0 0.0
  %273 = vmatpush1.msra.mxu0 0.0
  %274 = vmatprep.subr.mxu0 0.0
  %275 = vmatpush1.msra.mxu0 0.0
  %276 = vmatprep.subr.mxu0 0.0
  %277 = vmatpush1.msra.mxu0 0.0
  %278 = vmatprep.subr.mxu0 0.0
  %279 = vmatpush1.msra.mxu0 0.0
  %280 = vmatprep.subr.mxu0 0.0
  %281 = vmatpush1.msra.mxu0 0.0
  %282 = vmatprep.subr.mxu0 0.0
  %283 = vmatpush1.msra.mxu0 0.0
  %284 = vmatprep.subr.mxu0 0.0
  %285 = vmatpush1.msra.mxu0 0.0
  %286 = vmatprep.subr.mxu0 0.0
  %287 = vmatpush1.msra.mxu0 0.0
  %288 = vmatprep.subr.mxu0 0.0
  %289 = vmatpush1.msra.mxu0 0.0
  %290 = vmatprep.subr.mxu0 0.0
  %291 = vmatpush1.msra.mxu0 0.0
  %292 = vmatprep.subr.mxu0 0.0
  %293 = vmatpush1.msra.mxu0 0.0
  %294 = vmatprep.subr.mxu0 0.0
  %295 = vmatpush1.msra.mxu0 0.0
  %296 = vmatprep.subr.mxu0 0.0
  %297 = vmatpush1.msra.mxu0 0.0
  %298 = vmatprep.subr.mxu0 0.0
  %299 = vmatpush1.msra.mxu0 0.0
  %300 = vmatprep.subr.mxu0 0.0
  %301 = vmatpush1.msra.mxu0 0.0
  %302 = vmatprep.subr.mxu0 0.0
  %303 = vmatpush1.msra.mxu0 0.0
  %304 = vmatprep.subr.mxu0 0.0
  %305 = vmatpush1.msra.mxu0 0.0
  %306 = vmatprep.subr.mxu0 0.0
  %307 = vmatpush1.msra.mxu0 0.0
  %308 = vmatprep.subr.mxu0 0.0
  %309 = vmatpush1.msra.mxu0 0.0
  %310 = vmatprep.subr.mxu0 0.0
  %311 = vmatpush1.msra.mxu0 0.0
  %312 = vmatprep.subr.mxu0 0.0
  %313 = vmatpush1.msra.mxu0 0.0
  %314 = vmatprep.subr.mxu0 0.0
  %315 = vmatpush1.msra.mxu0 0.0
  %316 = vmatprep.subr.mxu0 0.0
  %317 = vmatpush1.msra.mxu0 0.0
  %318 = vmatprep.subr.mxu0 0.0
  %319 = vmatpush1.msra.mxu0 0.0
  %320 = vmatprep.mubr.f32.mxu0 0.0
  %v321 = vand.u32 %v44, 4294901760
  %v322 = vsub.f32 %v44, %v321
  %323 = vmatmul.mubr.f32.gmra.mrb[0].mxu0 %v322
  %v324 = vpop.f32.mrb[0].mxu0
  %v325 = vadd.f32 %v237, %v324
  %v326 = vpop.f32.mrb[0].mxu0
  %327 = vdwg.mxu0
  %328 = vmatprep.subr.mxu0 0.0
  %v329 = vand.u32 %v27, 4294901760
  %330 = vmatpush1.msra.mxu0 %v329
  %331 = vmatprep.subr.mxu0 0.0
  %v332 = vand.u32 %v28, 4294901760
  %333 = vmatpush1.msra.mxu0 %v332
  %334 = vmatprep.subr.mxu0 0.0
  %v335 = vand.u32 %v29, 4294901760
  %336 = vmatpush1.msra.mxu0 %v335
  %337 = vmatprep.subr.mxu0 0.0
  %v338 = vand.u32 %v30, 4294901760
  %339 = vmatpush1.msra.mxu0 %v338
  %340 = vmatprep.subr.mxu0 0.0
  %v341 = vand.u32 %v31, 4294901760
  %342 = vmatpush1.msra.mxu0 %v341
  %343 = vmatprep.subr.mxu0 0.0
  %v344 = vand.u32 %v32, 4294901760
  %345 = vmatpush1.msra.mxu0 %v344
  %346 = vmatprep.subr.mxu0 0.0
  %v347 = vand.u32 %v33, 4294901760
  %348 = vmatpush1.msra.mxu0 %v347
  %349 = vmatprep.subr.mxu0 0.0
  %v350 = vand.u32 %v34, 4294901760
  %351 = vmatpush1.msra.mxu0 %v350
  %352 = vmatprep.subr.mxu0 0.0
  %353 = vmatpush1.msra.mxu0 0.0
  %354 = vmatprep.subr.mxu0 0.0
  %355 = vmatpush1.msra.mxu0 0.0
  %356 = vmatprep.subr.mxu0 0.0
  %357 = vmatpush1.msra.mxu0 0.0
  %358 = vmatprep.subr.mxu0 0.0
  %359 = vmatpush1.msra.mxu0 0.0
  %360 = vmatprep.subr.mxu0 0.0
  %361 = vmatpush1.msra.mxu0 0.0
  %362 = vmatprep.subr.mxu0 0.0
  %363 = vmatpush1.msra.mxu0 0.0
  %364 = vmatprep.subr.mxu0 0.0
  %365 = vmatpush1.msra.mxu0 0.0
  %366 = vmatprep.subr.mxu0 0.0
  %367 = vmatpush1.msra.mxu0 0.0
  %368 = vmatprep.subr.mxu0 0.0
  %369 = vmatpush1.msra.mxu0 0.0
  %370 = vmatprep.subr.mxu0 0.0
  %371 = vmatpush1.msra.mxu0 0.0
  %372 = vmatprep.subr.mxu0 0.0
  %373 = vmatpush1.msra.mxu0 0.0
  %374 = vmatprep.subr.mxu0 0.0
  %375 = vmatpush1.msra.mxu0 0.0
  %376 = vmatprep.subr.mxu0 0.0
  %377 = vmatpush1.msra.mxu0 0.0
  %378 = vmatprep.subr.mxu0 0.0
  %379 = vmatpush1.msra.mxu0 0.0
  %380 = vmatprep.subr.mxu0 0.0
  %381 = vmatpush1.msra.mxu0 0.0
  %382 = vmatprep.subr.mxu0 0.0
  %383 = vmatpush1.msra.mxu0 0.0
  %384 = vmatprep.subr.mxu0 0.0
  %385 = vmatpush1.msra.mxu0 0.0
  %386 = vmatprep.subr.mxu0 0.0
  %387 = vmatpush1.msra.mxu0 0.0
  %388 = vmatprep.subr.mxu0 0.0
  %389 = vmatpush1.msra.mxu0 0.0
  %390 = vmatprep.subr.mxu0 0.0
  %391 = vmatpush1.msra.mxu0 0.0
  %392 = vmatprep.subr.mxu0 0.0
  %393 = vmatpush1.msra.mxu0 0.0
  %394 = vmatprep.subr.mxu0 0.0
  %395 = vmatpush1.msra.mxu0 0.0
  %396 = vmatprep.subr.mxu0 0.0
  %397 = vmatpush1.msra.mxu0 0.0
  %398 = vmatprep.subr.mxu0 0.0
  %399 = vmatpush1.msra.mxu0 0.0
  %400 = vmatprep.mubr.f32.mxu0 0.0
  %v401 = vand.u32 %v44, 4294901760
  %v402 = vsub.f32 %v44, %v401
  %v403 = vand.u32 %v402, 4294901760
  %404 = vmatmul.mubr.f32.gmra.mrb[0].mxu0 %v403
  %v405 = vpop.f32.mrb[0].mxu0
  %v406 = vadd.f32 %v325, %v405
  %v407 = vpop.f32.mrb[0].mxu0
  %408 = vdwg.mxu0
  %409 = vmatprep.subr.mxu0 0.0
  %v410 = vand.u32 %v27, 4294901760
  %v411 = vsub.f32 %v27, %v410
  %v412 = vand.u32 %v411, 4294901760
  %413 = vmatpush1.msra.mxu0 %v412
  %414 = vmatprep.subr.mxu0 0.0
  %v415 = vand.u32 %v28, 4294901760
  %v416 = vsub.f32 %v28, %v415
  %v417 = vand.u32 %v416, 4294901760
  %418 = vmatpush1.msra.mxu0 %v417
  %419 = vmatprep.subr.mxu0 0.0
  %v420 = vand.u32 %v29, 4294901760
  %v421 = vsub.f32 %v29, %v420
  %v422 = vand.u32 %v421, 4294901760
  %423 = vmatpush1.msra.mxu0 %v422
  %424 = vmatprep.subr.mxu0 0.0
  %v425 = vand.u32 %v30, 4294901760
  %v426 = vsub.f32 %v30, %v425
  %v427 = vand.u32 %v426, 4294901760
  %428 = vmatpush1.msra.mxu0 %v427
  %429 = vmatprep.subr.mxu0 0.0
  %v430 = vand.u32 %v31, 4294901760
  %v431 = vsub.f32 %v31, %v430
  %v432 = vand.u32 %v431, 4294901760
  %433 = vmatpush1.msra.mxu0 %v432
  %434 = vmatprep.subr.mxu0 0.0
  %v435 = vand.u32 %v32, 4294901760
  %v436 = vsub.f32 %v32, %v435
  %v437 = vand.u32 %v436, 4294901760
  %438 = vmatpush1.msra.mxu0 %v437
  %439 = vmatprep.subr.mxu0 0.0
  %v440 = vand.u32 %v33, 4294901760
  %v441 = vsub.f32 %v33, %v440
  %v442 = vand.u32 %v441, 4294901760
  %443 = vmatpush1.msra.mxu0 %v442
  %444 = vmatprep.subr.mxu0 0.0
  %v445 = vand.u32 %v34, 4294901760
  %v446 = vsub.f32 %v34, %v445
  %v447 = vand.u32 %v446, 4294901760
  %448 = vmatpush1.msra.mxu0 %v447
  %449 = vmatprep.subr.mxu0 0.0
  %450 = vmatpush1.msra.mxu0 0.0
  %451 = vmatprep.subr.mxu0 0.0
  %452 = vmatpush1.msra.mxu0 0.0
  %453 = vmatprep.subr.mxu0 0.0
  %454 = vmatpush1.msra.mxu0 0.0
  %455 = vmatprep.subr.mxu0 0.0
  %456 = vmatpush1.msra.mxu0 0.0
  %457 = vmatprep.subr.mxu0 0.0
  %458 = vmatpush1.msra.mxu0 0.0
  %459 = vmatprep.subr.mxu0 0.0
  %460 = vmatpush1.msra.mxu0 0.0
  %461 = vmatprep.subr.mxu0 0.0
  %462 = vmatpush1.msra.mxu0 0.0
  %463 = vmatprep.subr.mxu0 0.0
  %464 = vmatpush1.msra.mxu0 0.0
  %465 = vmatprep.subr.mxu0 0.0
  %466 = vmatpush1.msra.mxu0 0.0
  %467 = vmatprep.subr.mxu0 0.0
  %468 = vmatpush1.msra.mxu0 0.0
  %469 = vmatprep.subr.mxu0 0.0
  %470 = vmatpush1.msra.mxu0 0.0
  %471 = vmatprep.subr.mxu0 0.0
  %472 = vmatpush1.msra.mxu0 0.0
  %473 = vmatprep.subr.mxu0 0.0
  %474 = vmatpush1.msra.mxu0 0.0
  %475 = vmatprep.subr.mxu0 0.0
  %476 = vmatpush1.msra.mxu0 0.0
  %477 = vmatprep.subr.mxu0 0.0
  %478 = vmatpush1.msra.mxu0 0.0
  %479 = vmatprep.subr.mxu0 0.0
  %480 = vmatpush1.msra.mxu0 0.0
  %481 = vmatprep.subr.mxu0 0.0
  %482 = vmatpush1.msra.mxu0 0.0
  %483 = vmatprep.subr.mxu0 0.0
  %484 = vmatpush1.msra.mxu0 0.0
  %485 = vmatprep.subr.mxu0 0.0
  %486 = vmatpush1.msra.mxu0 0.0
  %487 = vmatprep.subr.mxu0 0.0
  %488 = vmatpush1.msra.mxu0 0.0
  %489 = vmatprep.subr.mxu0 0.0
  %490 = vmatpush1.msra.mxu0 0.0
  %491 = vmatprep.subr.mxu0 0.0
  %492 = vmatpush1.msra.mxu0 0.0
  %493 = vmatprep.subr.mxu0 0.0
  %494 = vmatpush1.msra.mxu0 0.0
  %495 = vmatprep.subr.mxu0 0.0
  %496 = vmatpush1.msra.mxu0 0.0
  %497 = vmatprep.mubr.f32.mxu0 0.0
  %v498 = vand.u32 %v44, 4294901760
  %499 = vmatmul.mubr.f32.gmra.mrb[0].mxu0 %v498
  %v500 = vpop.f32.mrb[0].mxu0
  %v501 = vadd.f32 %v406, %v500
  %v502 = vpop.f32.mrb[0].mxu0
  %503 = vdwg.mxu0
  %504 = vmatprep.subr.mxu0 0.0
  %v505 = vand.u32 %v27, 4294901760
  %506 = vmatpush1.msra.mxu0 %v505
  %507 = vmatprep.subr.mxu0 0.0
  %v508 = vand.u32 %v28, 4294901760
  %509 = vmatpush1.msra.mxu0 %v508
  %510 = vmatprep.subr.mxu0 0.0
  %v511 = vand.u32 %v29, 4294901760
  %512 = vmatpush1.msra.mxu0 %v511
  %513 = vmatprep.subr.mxu0 0.0
  %v514 = vand.u32 %v30, 4294901760
  %515 = vmatpush1.msra.mxu0 %v514
  %516 = vmatprep.subr.mxu0 0.0
  %v517 = vand.u32 %v31, 4294901760
  %518 = vmatpush1.msra.mxu0 %v517
  %519 = vmatprep.subr.mxu0 0.0
  %v520 = vand.u32 %v32, 4294901760
  %521 = vmatpush1.msra.mxu0 %v520
  %522 = vmatprep.subr.mxu0 0.0
  %v523 = vand.u32 %v33, 4294901760
  %524 = vmatpush1.msra.mxu0 %v523
  %525 = vmatprep.subr.mxu0 0.0
  %v526 = vand.u32 %v34, 4294901760
  %527 = vmatpush1.msra.mxu0 %v526
  %528 = vmatprep.subr.mxu0 0.0
  %529 = vmatpush1.msra.mxu0 0.0
  %530 = vmatprep.subr.mxu0 0.0
  %531 = vmatpush1.msra.mxu0 0.0
  %532 = vmatprep.subr.mxu0 0.0
  %533 = vmatpush1.msra.mxu0 0.0
  %534 = vmatprep.subr.mxu0 0.0
  %535 = vmatpush1.msra.mxu0 0.0
  %536 = vmatprep.subr.mxu0 0.0
  %537 = vmatpush1.msra.mxu0 0.0
  %538 = vmatprep.subr.mxu0 0.0
  %539 = vmatpush1.msra.mxu0 0.0
  %540 = vmatprep.subr.mxu0 0.0
  %541 = vmatpush1.msra.mxu0 0.0
  %542 = vmatprep.subr.mxu0 0.0
  %543 = vmatpush1.msra.mxu0 0.0
  %544 = vmatprep.subr.mxu0 0.0
  %545 = vmatpush1.msra.mxu0 0.0
  %546 = vmatprep.subr.mxu0 0.0
  %547 = vmatpush1.msra.mxu0 0.0
  %548 = vmatprep.subr.mxu0 0.0
  %549 = vmatpush1.msra.mxu0 0.0
  %550 = vmatprep.subr.mxu0 0.0
  %551 = vmatpush1.msra.mxu0 0.0
  %552 = vmatprep.subr.mxu0 0.0
  %553 = vmatpush1.msra.mxu0 0.0
  %554 = vmatprep.subr.mxu0 0.0
  %555 = vmatpush1.msra.mxu0 0.0
  %556 = vmatprep.subr.mxu0 0.0
  %557 = vmatpush1.msra.mxu0 0.0
  %558 = vmatprep.subr.mxu0 0.0
  %559 = vmatpush1.msra.mxu0 0.0
  %560 = vmatprep.subr.mxu0 0.0
  %561 = vmatpush1.msra.mxu0 0.0
  %562 = vmatprep.subr.mxu0 0.0
  %563 = vmatpush1.msra.mxu0 0.0
  %564 = vmatprep.subr.mxu0 0.0
  %565 = vmatpush1.msra.mxu0 0.0
  %566 = vmatprep.subr.mxu0 0.0
  %567 = vmatpush1.msra.mxu0 0.0
  %568 = vmatprep.subr.mxu0 0.0
  %569 = vmatpush1.msra.mxu0 0.0
  %570 = vmatprep.subr.mxu0 0.0
  %571 = vmatpush1.msra.mxu0 0.0
  %572 = vmatprep.subr.mxu0 0.0
  %573 = vmatpush1.msra.mxu0 0.0
  %574 = vmatprep.subr.mxu0 0.0
  %575 = vmatpush1.msra.mxu0 0.0
  %576 = vmatprep.mubr.f32.mxu0 0.0
  %v577 = vand.u32 %v44, 4294901760
  %578 = vmatmul.mubr.f32.gmra.mrb[0].mxu0 %v577
  %v579 = vpop.f32.mrb[0].mxu0
  %v580 = vadd.f32 %v501, %v579
  %v581 = vpop.f32.mrb[0].mxu0
  %582 = vdwg.mxu0
  %v583 = vmax.f32 %v580, 0.0
  %v584 = vld [vmem:[%s3] sm:$0xff]
  %v585 = vld [vmem:[%s3 + $0x8] sm:$0xff]
  %v586 = vld [vmem:[%s3 + $0x10] sm:$0xff]
  %v587 = vld [vmem:[%s3 + $0x18] sm:$0xff]
  %v588 = vld [vmem:[%s4] sm:$0x1]
  %v590 = vlaneseq
  %v591 = vshrl.u32 %v590, 7
  %v592 = vsub.s32 0, %v591
  %v593 = vrot.slane %v588, %v592
  %vm595 = vcmask 261120
  %v597 = vsel %vm595, %v583, 0
  %599 = vmatprep.subr.mxu0 0.0
  %v600 = vand.u32 %v584, 4294901760
  %601 = vmatpush1.msra.mxu0 %v600
  %602 = vmatprep.subr.mxu0 0.0
  %v603 = vand.u32 %v585, 4294901760
  %604 = vmatpush1.msra.mxu0 %v603
  %605 = vmatprep.subr.mxu0 0.0
  %v606 = vand.u32 %v586, 4294901760
  %607 = vmatpush1.msra.mxu0 %v606
  %608 = vmatprep.subr.mxu0 0.0
  %v609 = vand.u32 %v587, 4294901760
  %610 = vmatpush1.msra.mxu0 %v609
  %611 = vmatprep.subr.mxu0 0.0
  %612 = vmatpush1.msra.mxu0 0.0
  %613 = vmatprep.subr.mxu0 0.0
  %614 = vmatpush1.msra.mxu0 0.0
  %615 = vmatprep.subr.mxu0 0.0
  %616 = vmatpush1.msra.mxu0 0.0
  %617 = vmatprep.subr.mxu0 0.0
  %618 = vmatpush1.msra.mxu0 0.0
  %619 = vmatprep.subr.mxu0 0.0
  %620 = vmatpush1.msra.mxu0 0.0
  %621 = vmatprep.subr.mxu0 0.0
  %622 = vmatpush1.msra.mxu0 0.0
  %623 = vmatprep.subr.mxu0 0.0
  %624 = vmatpush1.msra.mxu0 0.0
  %625 = vmatprep.subr.mxu0 0.0
  %626 = vmatpush1.msra.mxu0 0.0
  %627 = vmatprep.subr.mxu0 0.0
  %628 = vmatpush1.msra.mxu0 0.0
  %629 = vmatprep.subr.mxu0 0.0
  %630 = vmatpush1.msra.mxu0 0.0
  %631 = vmatprep.subr.mxu0 0.0
  %632 = vmatpush1.msra.mxu0 0.0
  %633 = vmatprep.subr.mxu0 0.0
  %634 = vmatpush1.msra.mxu0 0.0
  %635 = vmatprep.subr.mxu0 0.0
  %636 = vmatpush1.msra.mxu0 0.0
  %637 = vmatprep.subr.mxu0 0.0
  %638 = vmatpush1.msra.mxu0 0.0
  %639 = vmatprep.subr.mxu0 0.0
  %640 = vmatpush1.msra.mxu0 0.0
  %641 = vmatprep.subr.mxu0 0.0
  %642 = vmatpush1.msra.mxu0 0.0
  %643 = vmatprep.subr.mxu0 0.0
  %644 = vmatpush1.msra.mxu0 0.0
  %645 = vmatprep.subr.mxu0 0.0
  %646 = vmatpush1.msra.mxu0 0.0
  %647 = vmatprep.subr.mxu0 0.0
  %648 = vmatpush1.msra.mxu0 0.0
  %649 = vmatprep.subr.mxu0 0.0
  %650 = vmatpush1.msra.mxu0 0.0
  %651 = vmatprep.subr.mxu0 0.0
  %652 = vmatpush1.msra.mxu0 0.0
  %653 = vmatprep.subr.mxu0 0.0
  %654 = vmatpush1.msra.mxu0 0.0
  %655 = vmatprep.subr.mxu0 0.0
  %656 = vmatpush1.msra.mxu0 0.0
  %657 = vmatprep.subr.mxu0 0.0
  %658 = vmatpush1.msra.mxu0 0.0
  %659 = vmatprep.subr.mxu0 0.0
  %660 = vmatpush1.msra.mxu0 0.0
  %661 = vmatprep.subr.mxu0 0.0
  %662 = vmatpush1.msra.mxu0 0.0
  %663 = vmatprep.subr.mxu0 0.0
  %664 = vmatpush1.msra.mxu0 0.0
  %665 = vmatprep.subr.mxu0 0.0
  %666 = vmatpush1.msra.mxu0 0.0
  %667 = vmatprep.mubr.f32.mxu0 0.0
  %v668 = vand.u32 %v597, 4294901760
  %v669 = vsub.f32 %v597, %v668
  %v670 = vand.u32 %v669, 4294901760
  %v671 = vsub.f32 %v669, %v670
  %v672 = vand.u32 %v671, 4294901760
  %673 = vmatmul.mubr.f32.gmra.mrb[0].mxu0 %v672
  %v674 = vpop.f32.mrb[0].mxu0
  %v675 = vadd.f32 %v593, %v674
  %v676 = vpop.f32.mrb[0].mxu0
  %677 = vdwg.mxu0
  %678 = vmatprep.subr.mxu0 0.0
  %v679 = vand.u32 %v584, 4294901760
  %v680 = vsub.f32 %v584, %v679
  %v681 = vand.u32 %v680, 4294901760
  %v682 = vsub.f32 %v680, %v681
  %v683 = vand.u32 %v682, 4294901760
  %684 = vmatpush1.msra.mxu0 %v683
  %685 = vmatprep.subr.mxu0 0.0
  %v686 = vand.u32 %v585, 4294901760
  %v687 = vsub.f32 %v585, %v686
  %v688 = vand.u32 %v687, 4294901760
  %v689 = vsub.f32 %v687, %v688
  %v690 = vand.u32 %v689, 4294901760
  %691 = vmatpush1.msra.mxu0 %v690
  %692 = vmatprep.subr.mxu0 0.0
  %v693 = vand.u32 %v586, 4294901760
  %v694 = vsub.f32 %v586, %v693
  %v695 = vand.u32 %v694, 4294901760
  %v696 = vsub.f32 %v694, %v695
  %v697 = vand.u32 %v696, 4294901760
  %698 = vmatpush1.msra.mxu0 %v697
  %699 = vmatprep.subr.mxu0 0.0
  %v700 = vand.u32 %v587, 4294901760
  %v701 = vsub.f32 %v587, %v700
  %v702 = vand.u32 %v701, 4294901760
  %v703 = vsub.f32 %v701, %v702
  %v704 = vand.u32 %v703, 4294901760
  %705 = vmatpush1.msra.mxu0 %v704
  %706 = vmatprep.subr.mxu0 0.0
  %707 = vmatpush1.msra.mxu0 0.0
  %708 = vmatprep.subr.mxu0 0.0
  %709 = vmatpush1.msra.mxu0 0.0
  %710 = vmatprep.subr.mxu0 0.0
  %711 = vmatpush1.msra.mxu0 0.0
  %712 = vmatprep.subr.mxu0 0.0
  %713 = vmatpush1.msra.mxu0 0.0
  %714 = vmatprep.subr.mxu0 0.0
  %715 = vmatpush1.msra.mxu0 0.0
  %716 = vmatprep.subr.mxu0 0.0
  %717 = vmatpush1.msra.mxu0 0.0
  %718 = vmatprep.subr.mxu0 0.0
  %719 = vmatpush1.msra.mxu0 0.0
  %720 = vmatprep.subr.mxu0 0.0
  %721 = vmatpush1.msra.mxu0 0.0
  %722 = vmatprep.subr.mxu0 0.0
  %723 = vmatpush1.msra.mxu0 0.0
  %724 = vmatprep.subr.mxu0 0.0
  %725 = vmatpush1.msra.mxu0 0.0
  %726 = vmatprep.subr.mxu0 0.0
  %727 = vmatpush1.msra.mxu0 0.0
  %728 = vmatprep.subr.mxu0 0.0
  %729 = vmatpush1.msra.mxu0 0.0
  %730 = vmatprep.subr.mxu0 0.0
  %731 = vmatpush1.msra.mxu0 0.0
  %732 = vmatprep.subr.mxu0 0.0
  %733 = vmatpush1.msra.mxu0 0.0
  %734 = vmatprep.subr.mxu0 0.0
  %735 = vmatpush1.msra.mxu0 0.0
  %736 = vmatprep.subr.mxu0 0.0
  %737 = vmatpush1.msra.mxu0 0.0
  %738 = vmatprep.subr.mxu0 0.0
  %739 = vmatpush1.msra.mxu0 0.0
  %740 = vmatprep.subr.mxu0 0.0
  %741 = vmatpush1.msra.mxu0 0.0
  %742 = vmatprep.subr.mxu0 0.0
  %743 = vmatpush1.msra.mxu0 0.0
  %744 = vmatprep.subr.mxu0 0.0
  %745 = vmatpush1.msra.mxu0 0.0
  %746 = vmatprep.subr.mxu0 0.0
  %747 = vmatpush1.msra.mxu0 0.0
  %748 = vmatprep.subr.mxu0 0.0
  %749 = vmatpush1.msra.mxu0 0.0
  %750 = vmatprep.subr.mxu0 0.0
  %751 = vmatpush1.msra.mxu0 0.0
  %752 = vmatprep.subr.mxu0 0.0
  %753 = vmatpush1.msra.mxu0 0.0
  %754 = vmatprep.subr.mxu0 0.0
  %755 = vmatpush1.msra.mxu0 0.0
  %756 = vmatprep.subr.mxu0 0.0
  %757 = vmatpush1.msra.mxu0 0.0
  %758 = vmatprep.subr.mxu0 0.0
  %759 = vmatpush1.msra.mxu0 0.0
  %760 = vmatprep.subr.mxu0 0.0
  %761 = vmatpush1.msra.mxu0 0.0
  %762 = vmatprep.mubr.f32.mxu0 0.0
  %v763 = vand.u32 %v597, 4294901760
  %764 = vmatmul.mubr.f32.gmra.mrb[0].mxu0 %v763
  %v765 = vpop.f32.mrb[0].mxu0
  %v766 = vadd.f32 %v675, %v765
  %v767 = vpop.f32.mrb[0].mxu0
  %768 = vdwg.mxu0
  %769 = vmatprep.subr.mxu0 0.0
  %v770 = vand.u32 %v584, 4294901760
  %v771 = vsub.f32 %v584, %v770
  %772 = vmatpush1.msra.mxu0 %v771
  %773 = vmatprep.subr.mxu0 0.0
  %v774 = vand.u32 %v585, 4294901760
  %v775 = vsub.f32 %v585, %v774
  %776 = vmatpush1.msra.mxu0 %v775
  %777 = vmatprep.subr.mxu0 0.0
  %v778 = vand.u32 %v586, 4294901760
  %v779 = vsub.f32 %v586, %v778
  %780 = vmatpush1.msra.mxu0 %v779
  %781 = vmatprep.subr.mxu0 0.0
  %v782 = vand.u32 %v587, 4294901760
  %v783 = vsub.f32 %v587, %v782
  %784 = vmatpush1.msra.mxu0 %v783
  %785 = vmatprep.subr.mxu0 0.0
  %786 = vmatpush1.msra.mxu0 0.0
  %787 = vmatprep.subr.mxu0 0.0
  %788 = vmatpush1.msra.mxu0 0.0
  %789 = vmatprep.subr.mxu0 0.0
  %790 = vmatpush1.msra.mxu0 0.0
  %791 = vmatprep.subr.mxu0 0.0
  %792 = vmatpush1.msra.mxu0 0.0
  %793 = vmatprep.subr.mxu0 0.0
  %794 = vmatpush1.msra.mxu0 0.0
  %795 = vmatprep.subr.mxu0 0.0
  %796 = vmatpush1.msra.mxu0 0.0
  %797 = vmatprep.subr.mxu0 0.0
  %798 = vmatpush1.msra.mxu0 0.0
  %799 = vmatprep.subr.mxu0 0.0
  %800 = vmatpush1.msra.mxu0 0.0
  %801 = vmatprep.subr.mxu0 0.0
  %802 = vmatpush1.msra.mxu0 0.0
  %803 = vmatprep.subr.mxu0 0.0
  %804 = vmatpush1.msra.mxu0 0.0
  %805 = vmatprep.subr.mxu0 0.0
  %806 = vmatpush1.msra.mxu0 0.0
  %807 = vmatprep.subr.mxu0 0.0
  %808 = vmatpush1.msra.mxu0 0.0
  %809 = vmatprep.subr.mxu0 0.0
  %810 = vmatpush1.msra.mxu0 0.0
  %811 = vmatprep.subr.mxu0 0.0
  %812 = vmatpush1.msra.mxu0 0.0
  %813 = vmatprep.subr.mxu0 0.0
  %814 = vmatpush1.msra.mxu0 0.0
  %815 = vmatprep.subr.mxu0 0.0
  %816 = vmatpush1.msra.mxu0 0.0
  %817 = vmatprep.subr.mxu0 0.0
  %818 = vmatpush1.msra.mxu0 0.0
  %819 = vmatprep.subr.mxu0 0.0
  %820 = vmatpush1.msra.mxu0 0.0
  %821 = vmatprep.subr.mxu0 0.0
  %822 = vmatpush1.msra.mxu0 0.0
  %823 = vmatprep.subr.mxu0 0.0
  %824 = vmatpush1.msra.mxu0 0.0
  %825 = vmatprep.subr.mxu0 0.0
  %826 = vmatpush1.msra.mxu0 0.0
  %827 = vmatprep.subr.mxu0 0.0
  %828 = vmatpush1.msra.mxu0 0.0
  %829 = vmatprep.subr.mxu0 0.0
  %830 = vmatpush1.msra.mxu0 0.0
  %831 = vmatprep.subr.mxu0 0.0
  %832 = vmatpush1.msra.mxu0 0.0
  %833 = vmatprep.subr.mxu0 0.0
  %834 = vmatpush1.msra.mxu0 0.0
  %835 = vmatprep.subr.mxu0 0.0
  %836 = vmatpush1.msra.mxu0 0.0
  %837 = vmatprep.subr.mxu0 0.0
  %838 = vmatpush1.msra.mxu0 0.0
  %839 = vmatprep.subr.mxu0 0.0
  %840 = vmatpush1.msra.mxu0 0.0
  %841 = vmatprep.mubr.f32.mxu0 0.0
  %v842 = vand.u32 %v597, 4294901760
  %v843 = vsub.f32 %v597, %v842
  %844 = vmatmul.mubr.f32.gmra.mrb[0].mxu0 %v843
  %v845 = vpop.f32.mrb[0].mxu0
  %v846 = vadd.f32 %v766, %v845
  %v847 = vpop.f32.mrb[0].mxu0
  %848 = vdwg.mxu0
  %849 = vmatprep.subr.mxu0 0.0
  %v850 = vand.u32 %v584, 4294901760
  %851 = vmatpush1.msra.mxu0 %v850
  %852 = vmatprep.subr.mxu0 0.0
  %v853 = vand.u32 %v585, 4294901760
  %854 = vmatpush1.msra.mxu0 %v853
  %855 = vmatprep.subr.mxu0 0.0
  %v856 = vand.u32 %v586, 4294901760
  %857 = vmatpush1.msra.mxu0 %v856
  %858 = vmatprep.subr.mxu0 0.0
  %v859 = vand.u32 %v587, 4294901760
  %860 = vmatpush1.msra.mxu0 %v859
  %861 = vmatprep.subr.mxu0 0.0
  %862 = vmatpush1.msra.mxu0 0.0
  %863 = vmatprep.subr.mxu0 0.0
  %864 = vmatpush1.msra.mxu0 0.0
  %865 = vmatprep.subr.mxu0 0.0
  %866 = vmatpush1.msra.mxu0 0.0
  %867 = vmatprep.subr.mxu0 0.0
  %868 = vmatpush1.msra.mxu0 0.0
  %869 = vmatprep.subr.mxu0 0.0
  %870 = vmatpush1.msra.mxu0 0.0
  %871 = vmatprep.subr.mxu0 0.0
  %872 = vmatpush1.msra.mxu0 0.0
  %873 = vmatprep.subr.mxu0 0.0
  %874 = vmatpush1.msra.mxu0 0.0
  %875 = vmatprep.subr.mxu0 0.0
  %876 = vmatpush1.msra.mxu0 0.0
  %877 = vmatprep.subr.mxu0 0.0
  %878 = vmatpush1.msra.mxu0 0.0
  %879 = vmatprep.subr.mxu0 0.0
  %880 = vmatpush1.msra.mxu0 0.0
  %881 = vmatprep.subr.mxu0 0.0
  %882 = vmatpush1.msra.mxu0 0.0
  %883 = vmatprep.subr.mxu0 0.0
  %884 = vmatpush1.msra.mxu0 0.0
  %885 = vmatprep.subr.mxu0 0.0
  %886 = vmatpush1.msra.mxu0 0.0
  %887 = vmatprep.subr.mxu0 0.0
  %888 = vmatpush1.msra.mxu0 0.0
  %889 = vmatprep.subr.mxu0 0.0
  %890 = vmatpush1.msra.mxu0 0.0
  %891 = vmatprep.subr.mxu0 0.0
  %892 = vmatpush1.msra.mxu0 0.0
  %893 = vmatprep.subr.mxu0 0.0
  %894 = vmatpush1.msra.mxu0 0.0
  %895 = vmatprep.subr.mxu0 0.0
  %896 = vmatpush1.msra.mxu0 0.0
  %897 = vmatprep.subr.mxu0 0.0
  %898 = vmatpush1.msra.mxu0 0.0
  %899 = vmatprep.subr.mxu0 0.0
  %900 = vmatpush1.msra.mxu0 0.0
  %901 = vmatprep.subr.mxu0 0.0
  %902 = vmatpush1.msra.mxu0 0.0
  %903 = vmatprep.subr.mxu0 0.0
  %904 = vmatpush1.msra.mxu0 0.0
  %905 = vmatprep.subr.mxu0 0.0
  %906 = vmatpush1.msra.mxu0 0.0
  %907 = vmatprep.subr.mxu0 0.0
  %908 = vmatpush1.msra.mxu0 0.0
  %909 = vmatprep.subr.mxu0 0.0
  %910 = vmatpush1.msra.mxu0 0.0
  %911 = vmatprep.subr.mxu0 0.0
  %912 = vmatpush1.msra.mxu0 0.0
  %913 = vmatprep.subr.mxu0 0.0
  %914 = vmatpush1.msra.mxu0 0.0
  %915 = vmatprep.subr.mxu0 0.0
  %916 = vmatpush1.msra.mxu0 0.0
  %917 = vmatprep.mubr.f32.mxu0 0.0
  %v918 = vand.u32 %v597, 4294901760
  %v919 = vsub.f32 %v597, %v918
  %v920 = vand.u32 %v919, 4294901760
  %921 = vmatmul.mubr.f32.gmra.mrb[0].mxu0 %v920
  %v922 = vpop.f32.mrb[0].mxu0
  %v923 = vadd.f32 %v846, %v922
  %v924 = vpop.f32.mrb[0].mxu0
  %925 = vdwg.mxu0
  %926 = vmatprep.subr.mxu0 0.0
  %v927 = vand.u32 %v584, 4294901760
  %v928 = vsub.f32 %v584, %v927
  %v929 = vand.u32 %v928, 4294901760
  %930 = vmatpush1.msra.mxu0 %v929
  %931 = vmatprep.subr.mxu0 0.0
  %v932 = vand.u32 %v585, 4294901760
  %v933 = vsub.f32 %v585, %v932
  %v934 = vand.u32 %v933, 4294901760
  %935 = vmatpush1.msra.mxu0 %v934
  %936 = vmatprep.subr.mxu0 0.0
  %v937 = vand.u32 %v586, 4294901760
  %v938 = vsub.f32 %v586, %v937
  %v939 = vand.u32 %v938, 4294901760
  %940 = vmatpush1.msra.mxu0 %v939
  %941 = vmatprep.subr.mxu0 0.0
  %v942 = vand.u32 %v587, 4294901760
  %v943 = vsub.f32 %v587, %v942
  %v944 = vand.u32 %v943, 4294901760
  %945 = vmatpush1.msra.mxu0 %v944
  %946 = vmatprep.subr.mxu0 0.0
  %947 = vmatpush1.msra.mxu0 0.0
  %948 = vmatprep.subr.mxu0 0.0
  %949 = vmatpush1.msra.mxu0 0.0
  %950 = vmatprep.subr.mxu0 0.0
  %951 = vmatpush1.msra.mxu0 0.0
  %952 = vmatprep.subr.mxu0 0.0
  %953 = vmatpush1.msra.mxu0 0.0
  %954 = vmatprep.subr.mxu0 0.0
  %955 = vmatpush1.msra.mxu0 0.0
  %956 = vmatprep.subr.mxu0 0.0
  %957 = vmatpush1.msra.mxu0 0.0
  %958 = vmatprep.subr.mxu0 0.0
  %959 = vmatpush1.msra.mxu0 0.0
  %960 = vmatprep.subr.mxu0 0.0
  %961 = vmatpush1.msra.mxu0 0.0
  %962 = vmatprep.subr.mxu0 0.0
  %963 = vmatpush1.msra.mxu0 0.0
  %964 = vmatprep.subr.mxu0 0.0
  %965 = vmatpush1.msra.mxu0 0.0
  %966 = vmatprep.subr.mxu0 0.0
  %967 = vmatpush1.msra.mxu0 0.0
  %968 = vmatprep.subr.mxu0 0.0
  %969 = vmatpush1.msra.mxu0 0.0
  %970 = vmatprep.subr.mxu0 0.0
  %971 = vmatpush1.msra.mxu0 0.0
  %972 = vmatprep.subr.mxu0 0.0
  %973 = vmatpush1.msra.mxu0 0.0
  %974 = vmatprep.subr.mxu0 0.0
  %975 = vmatpush1.msra.mxu0 0.0
  %976 = vmatprep.subr.mxu0 0.0
  %977 = vmatpush1.msra.mxu0 0.0
  %978 = vmatprep.subr.mxu0 0.0
  %979 = vmatpush1.msra.mxu0 0.0
  %980 = vmatprep.subr.mxu0 0.0
  %981 = vmatpush1.msra.mxu0 0.0
  %982 = vmatprep.subr.mxu0 0.0
  %983 = vmatpush1.msra.mxu0 0.0
  %984 = vmatprep.subr.mxu0 0.0
  %985 = vmatpush1.msra.mxu0 0.0
  %986 = vmatprep.subr.mxu0 0.0
  %987 = vmatpush1.msra.mxu0 0.0
  %988 = vmatprep.subr.mxu0 0.0
  %989 = vmatpush1.msra.mxu0 0.0
  %990 = vmatprep.subr.mxu0 0.0
  %991 = vmatpush1.msra.mxu0 0.0
  %992 = vmatprep.subr.mxu0 0.0
  %993 = vmatpush1.msra.mxu0 0.0
  %994 = vmatprep.subr.mxu0 0.0
  %995 = vmatpush1.msra.mxu0 0.0
  %996 = vmatprep.subr.mxu0 0.0
  %997 = vmatpush1.msra.mxu0 0.0
  %998 = vmatprep.subr.mxu0 0.0
  %999 = vmatpush1.msra.mxu0 0.0
  %1000 = vmatprep.subr.mxu0 0.0
  %1001 = vmatpush1.msra.mxu0 0.0
  %1002 = vmatprep.mubr.f32.mxu0 0.0
  %v1003 = vand.u32 %v597, 4294901760
  %1004 = vmatmul.mubr.f32.gmra.mrb[0].mxu0 %v1003
  %v1005 = vpop.f32.mrb[0].mxu0
  %v1006 = vadd.f32 %v923, %v1005
  %v1007 = vpop.f32.mrb[0].mxu0
  %1008 = vdwg.mxu0
  %1009 = vmatprep.subr.mxu0 0.0
  %v1010 = vand.u32 %v584, 4294901760
  %1011 = vmatpush1.msra.mxu0 %v1010
  %1012 = vmatprep.subr.mxu0 0.0
  %v1013 = vand.u32 %v585, 4294901760
  %1014 = vmatpush1.msra.mxu0 %v1013
  %1015 = vmatprep.subr.mxu0 0.0
  %v1016 = vand.u32 %v586, 4294901760
  %1017 = vmatpush1.msra.mxu0 %v1016
  %1018 = vmatprep.subr.mxu0 0.0
  %v1019 = vand.u32 %v587, 4294901760
  %1020 = vmatpush1.msra.mxu0 %v1019
  %1021 = vmatprep.subr.mxu0 0.0
  %1022 = vmatpush1.msra.mxu0 0.0
  %1023 = vmatprep.subr.mxu0 0.0
  %1024 = vmatpush1.msra.mxu0 0.0
  %1025 = vmatprep.subr.mxu0 0.0
  %1026 = vmatpush1.msra.mxu0 0.0
  %1027 = vmatprep.subr.mxu0 0.0
  %1028 = vmatpush1.msra.mxu0 0.0
  %1029 = vmatprep.subr.mxu0 0.0
  %1030 = vmatpush1.msra.mxu0 0.0
  %1031 = vmatprep.subr.mxu0 0.0
  %1032 = vmatpush1.msra.mxu0 0.0
  %1033 = vmatprep.subr.mxu0 0.0
  %1034 = vmatpush1.msra.mxu0 0.0
  %1035 = vmatprep.subr.mxu0 0.0
  %1036 = vmatpush1.msra.mxu0 0.0
  %1037 = vmatprep.subr.mxu0 0.0
  %1038 = vmatpush1.msra.mxu0 0.0
  %1039 = vmatprep.subr.mxu0 0.0
  %1040 = vmatpush1.msra.mxu0 0.0
  %1041 = vmatprep.subr.mxu0 0.0
  %1042 = vmatpush1.msra.mxu0 0.0
  %1043 = vmatprep.subr.mxu0 0.0
  %1044 = vmatpush1.msra.mxu0 0.0
  %1045 = vmatprep.subr.mxu0 0.0
  %1046 = vmatpush1.msra.mxu0 0.0
  %1047 = vmatprep.subr.mxu0 0.0
  %1048 = vmatpush1.msra.mxu0 0.0
  %1049 = vmatprep.subr.mxu0 0.0
  %1050 = vmatpush1.msra.mxu0 0.0
  %1051 = vmatprep.subr.mxu0 0.0
  %1052 = vmatpush1.msra.mxu0 0.0
  %1053 = vmatprep.subr.mxu0 0.0
  %1054 = vmatpush1.msra.mxu0 0.0
  %1055 = vmatprep.subr.mxu0 0.0
  %1056 = vmatpush1.msra.mxu0 0.0
  %1057 = vmatprep.subr.mxu0 0.0
  %1058 = vmatpush1.msra.mxu0 0.0
  %1059 = vmatprep.subr.mxu0 0.0
  %1060 = vmatpush1.msra.mxu0 0.0
  %1061 = vmatprep.subr.mxu0 0.0
  %1062 = vmatpush1.msra.mxu0 0.0
  %1063 = vmatprep.subr.mxu0 0.0
  %1064 = vmatpush1.msra.mxu0 0.0
  %1065 = vmatprep.subr.mxu0 0.0
  %1066 = vmatpush1.msra.mxu0 0.0
  %1067 = vmatprep.subr.mxu0 0.0
  %1068 = vmatpush1.msra.mxu0 0.0
  %1069 = vmatprep.subr.mxu0 0.0
  %1070 = vmatpush1.msra.mxu0 0.0
  %1071 = vmatprep.subr.mxu0 0.0
  %1072 = vmatpush1.msra.mxu0 0.0
  %1073 = vmatprep.subr.mxu0 0.0
  %1074 = vmatpush1.msra.mxu0 0.0
  %1075 = vmatprep.subr.mxu0 0.0
  %1076 = vmatpush1.msra.mxu0 0.0
  %1077 = vmatprep.mubr.f32.mxu0 0.0
  %v1078 = vand.u32 %v597, 4294901760
  %1079 = vmatmul.mubr.f32.gmra.mrb[0].mxu0 %v1078
  %v1080 = vpop.f32.mrb[0].mxu0
  %v1081 = vadd.f32 %v1006, %v1080
  %v1082 = vpop.f32.mrb[0].mxu0
  %1083 = vdwg.mxu0
  %v1084 = vmax.f32 %v1081, 0.0
  %v1085 = vld [vmem:[%s5] sm:$0xff]
  %v1086 = vld [vmem:[%s5 + $0x8] sm:$0xff]
  %v1087 = vld [vmem:[%s5 + $0x10] sm:$0xf]
  %v1088 = vld [vmem:[%s6] sm:$0x1]
  %v1090 = vlaneseq
  %v1091 = vshrl.u32 %v1090, 7
  %v1092 = vsub.s32 0, %v1091
  %v1093 = vrot.slane %v1088, %v1092
  %vm1095 = vcmask 162816
  %v1097 = vsel %vm1095, %v1084, 0
  %vm1099 = vcmask 1043456
  %v1101 = vsel %vm1099, %v1087, 0
  %1103 = vmatprep.subr.mxu0 0.0
  %v1104 = vand.u32 %v1085, 4294901760
  %1105 = vmatpush1.msra.mxu0 %v1104
  %1106 = vmatprep.subr.mxu0 0.0
  %v1107 = vand.u32 %v1086, 4294901760
  %1108 = vmatpush1.msra.mxu0 %v1107
  %1109 = vmatprep.subr.mxu0 0.0
  %v1110 = vand.u32 %v1101, 4294901760
  %1111 = vmatpush1.msra.mxu0 %v1110
  %1112 = vmatprep.subr.mxu0 0.0
  %1113 = vmatpush1.msra.mxu0 0.0
  %1114 = vmatprep.subr.mxu0 0.0
  %1115 = vmatpush1.msra.mxu0 0.0
  %1116 = vmatprep.subr.mxu0 0.0
  %1117 = vmatpush1.msra.mxu0 0.0
  %1118 = vmatprep.subr.mxu0 0.0
  %1119 = vmatpush1.msra.mxu0 0.0
  %1120 = vmatprep.subr.mxu0 0.0
  %1121 = vmatpush1.msra.mxu0 0.0
  %1122 = vmatprep.subr.mxu0 0.0
  %1123 = vmatpush1.msra.mxu0 0.0
  %1124 = vmatprep.subr.mxu0 0.0
  %1125 = vmatpush1.msra.mxu0 0.0
  %1126 = vmatprep.subr.mxu0 0.0
  %1127 = vmatpush1.msra.mxu0 0.0
  %1128 = vmatprep.subr.mxu0 0.0
  %1129 = vmatpush1.msra.mxu0 0.0
  %1130 = vmatprep.subr.mxu0 0.0
  %1131 = vmatpush1.msra.mxu0 0.0
  %1132 = vmatprep.subr.mxu0 0.0
  %1133 = vmatpush1.msra.mxu0 0.0
  %1134 = vmatprep.subr.mxu0 0.0
  %1135 = vmatpush1.msra.mxu0 0.0
  %1136 = vmatprep.subr.mxu0 0.0
  %1137 = vmatpush1.msra.mxu0 0.0
  %1138 = vmatprep.subr.mxu0 0.0
  %1139 = vmatpush1.msra.mxu0 0.0
  %1140 = vmatprep.subr.mxu0 0.0
  %1141 = vmatpush1.msra.mxu0 0.0
  %1142 = vmatprep.subr.mxu0 0.0
  %1143 = vmatpush1.msra.mxu0 0.0
  %1144 = vmatprep.subr.mxu0 0.0
  %1145 = vmatpush1.msra.mxu0 0.0
  %1146 = vmatprep.subr.mxu0 0.0
  %1147 = vmatpush1.msra.mxu0 0.0
  %1148 = vmatprep.subr.mxu0 0.0
  %1149 = vmatpush1.msra.mxu0 0.0
  %1150 = vmatprep.subr.mxu0 0.0
  %1151 = vmatpush1.msra.mxu0 0.0
  %1152 = vmatprep.subr.mxu0 0.0
  %1153 = vmatpush1.msra.mxu0 0.0
  %1154 = vmatprep.subr.mxu0 0.0
  %1155 = vmatpush1.msra.mxu0 0.0
  %1156 = vmatprep.subr.mxu0 0.0
  %1157 = vmatpush1.msra.mxu0 0.0
  %1158 = vmatprep.subr.mxu0 0.0
  %1159 = vmatpush1.msra.mxu0 0.0
  %1160 = vmatprep.subr.mxu0 0.0
  %1161 = vmatpush1.msra.mxu0 0.0
  %1162 = vmatprep.subr.mxu0 0.0
  %1163 = vmatpush1.msra.mxu0 0.0
  %1164 = vmatprep.subr.mxu0 0.0
  %1165 = vmatpush1.msra.mxu0 0.0
  %1166 = vmatprep.subr.mxu0 0.0
  %1167 = vmatpush1.msra.mxu0 0.0
  %1168 = vmatprep.subr.mxu0 0.0
  %1169 = vmatpush1.msra.mxu0 0.0
  %1170 = vmatprep.mubr.f32.mxu0 0.0
  %v1171 = vand.u32 %v1097, 4294901760
  %v1172 = vsub.f32 %v1097, %v1171
  %v1173 = vand.u32 %v1172, 4294901760
  %v1174 = vsub.f32 %v1172, %v1173
  %v1175 = vand.u32 %v1174, 4294901760
  %1176 = vmatmul.mubr.f32.gmra.mrb[0].mxu0 %v1175
  %v1177 = vpop.f32.mrb[0].mxu0
  %v1178 = vadd.f32 %v1093, %v1177
  %v1179 = vpop.f32.mrb[0].mxu0
  %1180 = vdwg.mxu0
  %1181 = vmatprep.subr.mxu0 0.0
  %v1182 = vand.u32 %v1085, 4294901760
  %v1183 = vsub.f32 %v1085, %v1182
  %v1184 = vand.u32 %v1183, 4294901760
  %v1185 = vsub.f32 %v1183, %v1184
  %v1186 = vand.u32 %v1185, 4294901760
  %1187 = vmatpush1.msra.mxu0 %v1186
  %1188 = vmatprep.subr.mxu0 0.0
  %v1189 = vand.u32 %v1086, 4294901760
  %v1190 = vsub.f32 %v1086, %v1189
  %v1191 = vand.u32 %v1190, 4294901760
  %v1192 = vsub.f32 %v1190, %v1191
  %v1193 = vand.u32 %v1192, 4294901760
  %1194 = vmatpush1.msra.mxu0 %v1193
  %1195 = vmatprep.subr.mxu0 0.0
  %v1196 = vand.u32 %v1101, 4294901760
  %v1197 = vsub.f32 %v1101, %v1196
  %v1198 = vand.u32 %v1197, 4294901760
  %v1199 = vsub.f32 %v1197, %v1198
  %v1200 = vand.u32 %v1199, 4294901760
  %1201 = vmatpush1.msra.mxu0 %v1200
  %1202 = vmatprep.subr.mxu0 0.0
  %1203 = vmatpush1.msra.mxu0 0.0
  %1204 = vmatprep.subr.mxu0 0.0
  %1205 = vmatpush1.msra.mxu0 0.0
  %1206 = vmatprep.subr.mxu0 0.0
  %1207 = vmatpush1.msra.mxu0 0.0
  %1208 = vmatprep.subr.mxu0 0.0
  %1209 = vmatpush1.msra.mxu0 0.0
  %1210 = vmatprep.subr.mxu0 0.0
  %1211 = vmatpush1.msra.mxu0 0.0
  %1212 = vmatprep.subr.mxu0 0.0
  %1213 = vmatpush1.msra.mxu0 0.0
  %1214 = vmatprep.subr.mxu0 0.0
  %1215 = vmatpush1.msra.mxu0 0.0
  %1216 = vmatprep.subr.mxu0 0.0
  %1217 = vmatpush1.msra.mxu0 0.0
  %1218 = vmatprep.subr.mxu0 0.0
  %1219 = vmatpush1.msra.mxu0 0.0
  %1220 = vmatprep.subr.mxu0 0.0
  %1221 = vmatpush1.msra.mxu0 0.0
  %1222 = vmatprep.subr.mxu0 0.0
  %1223 = vmatpush1.msra.mxu0 0.0
  %1224 = vmatprep.subr.mxu0 0.0
  %1225 = vmatpush1.msra.mxu0 0.0
  %1226 = vmatprep.subr.mxu0 0.0
  %1227 = vmatpush1.msra.mxu0 0.0
  %1228 = vmatprep.subr.mxu0 0.0
  %1229 = vmatpush1.msra.mxu0 0.0
  %1230 = vmatprep.subr.mxu0 0.0
  %1231 = vmatpush1.msra.mxu0 0.0
  %1232 = vmatprep.subr.mxu0 0.0
  %1233 = vmatpush1.msra.mxu0 0.0
  %1234 = vmatprep.subr.mxu0 0.0
  %1235 = vmatpush1.msra.mxu0 0.0
  %1236 = vmatprep.subr.mxu0 0.0
  %1237 = vmatpush1.msra.mxu0 0.0
  %1238 = vmatprep.subr.mxu0 0.0
  %1239 = vmatpush1.msra.mxu0 0.0
  %1240 = vmatprep.subr.mxu0 0.0
  %1241 = vmatpush1.msra.mxu0 0.0
  %1242 = vmatprep.subr.mxu0 0.0
  %1243 = vmatpush1.msra.mxu0 0.0
  %1244 = vmatprep.subr.mxu0 0.0
  %1245 = vmatpush1.msra.mxu0 0.0
  %1246 = vmatprep.subr.mxu0 0.0
  %1247 = vmatpush1.msra.mxu0 0.0
  %1248 = vmatprep.subr.mxu0 0.0
  %1249 = vmatpush1.msra.mxu0 0.0
  %1250 = vmatprep.subr.mxu0 0.0
  %1251 = vmatpush1.msra.mxu0 0.0
  %1252 = vmatprep.subr.mxu0 0.0
  %1253 = vmatpush1.msra.mxu0 0.0
  %1254 = vmatprep.subr.mxu0 0.0
  %1255 = vmatpush1.msra.mxu0 0.0
  %1256 = vmatprep.subr.mxu0 0.0
  %1257 = vmatpush1.msra.mxu0 0.0
  %1258 = vmatprep.subr.mxu0 0.0
  %1259 = vmatpush1.msra.mxu0 0.0
  %1260 = vmatprep.mubr.f32.mxu0 0.0
  %v1261 = vand.u32 %v1097, 4294901760
  %1262 = vmatmul.mubr.f32.gmra.mrb[0].mxu0 %v1261
  %v1263 = vpop.f32.mrb[0].mxu0
  %v1264 = vadd.f32 %v1178, %v1263
  %v1265 = vpop.f32.mrb[0].mxu0
  %1266 = vdwg.mxu0
  %1267 = vmatprep.subr.mxu0 0.0
  %v1268 = vand.u32 %v1085, 4294901760
  %v1269 = vsub.f32 %v1085, %v1268
  %1270 = vmatpush1.msra.mxu0 %v1269
  %1271 = vmatprep.subr.mxu0 0.0
  %v1272 = vand.u32 %v1086, 4294901760
  %v1273 = vsub.f32 %v1086, %v1272
  %1274 = vmatpush1.msra.mxu0 %v1273
  %1275 = vmatprep.subr.mxu0 0.0
  %v1276 = vand.u32 %v1101, 4294901760
  %v1277 = vsub.f32 %v1101, %v1276
  %1278 = vmatpush1.msra.mxu0 %v1277
  %1279 = vmatprep.subr.mxu0 0.0
  %1280 = vmatpush1.msra.mxu0 0.0
  %1281 = vmatprep.subr.mxu0 0.0
  %1282 = vmatpush1.msra.mxu0 0.0
  %1283 = vmatprep.subr.mxu0 0.0
  %1284 = vmatpush1.msra.mxu0 0.0
  %1285 = vmatprep.subr.mxu0 0.0
  %1286 = vmatpush1.msra.mxu0 0.0
  %1287 = vmatprep.subr.mxu0 0.0
  %1288 = vmatpush1.msra.mxu0 0.0
  %1289 = vmatprep.subr.mxu0 0.0
  %1290 = vmatpush1.msra.mxu0 0.0
  %1291 = vmatprep.subr.mxu0 0.0
  %1292 = vmatpush1.msra.mxu0 0.0
  %1293 = vmatprep.subr.mxu0 0.0
  %1294 = vmatpush1.msra.mxu0 0.0
  %1295 = vmatprep.subr.mxu0 0.0
  %1296 = vmatpush1.msra.mxu0 0.0
  %1297 = vmatprep.subr.mxu0 0.0
  %1298 = vmatpush1.msra.mxu0 0.0
  %1299 = vmatprep.subr.mxu0 0.0
  %1300 = vmatpush1.msra.mxu0 0.0
  %1301 = vmatprep.subr.mxu0 0.0
  %1302 = vmatpush1.msra.mxu0 0.0
  %1303 = vmatprep.subr.mxu0 0.0
  %1304 = vmatpush1.msra.mxu0 0.0
  %1305 = vmatprep.subr.mxu0 0.0
  %1306 = vmatpush1.msra.mxu0 0.0
  %1307 = vmatprep.subr.mxu0 0.0
  %1308 = vmatpush1.msra.mxu0 0.0
  %1309 = vmatprep.subr.mxu0 0.0
  %1310 = vmatpush1.msra.mxu0 0.0
  %1311 = vmatprep.subr.mxu0 0.0
  %1312 = vmatpush1.msra.mxu0 0.0
  %1313 = vmatprep.subr.mxu0 0.0
  %1314 = vmatpush1.msra.mxu0 0.0
  %1315 = vmatprep.subr.mxu0 0.0
  %1316 = vmatpush1.msra.mxu0 0.0
  %1317 = vmatprep.subr.mxu0 0.0
  %1318 = vmatpush1.msra.mxu0 0.0
  %1319 = vmatprep.subr.mxu0 0.0
  %1320 = vmatpush1.msra.mxu0 0.0
  %1321 = vmatprep.subr.mxu0 0.0
  %1322 = vmatpush1.msra.mxu0 0.0
  %1323 = vmatprep.subr.mxu0 0.0
  %1324 = vmatpush1.msra.mxu0 0.0
  %1325 = vmatprep.subr.mxu0 0.0
  %1326 = vmatpush1.msra.mxu0 0.0
  %1327 = vmatprep.subr.mxu0 0.0
  %1328 = vmatpush1.msra.mxu0 0.0
  %1329 = vmatprep.subr.mxu0 0.0
  %1330 = vmatpush1.msra.mxu0 0.0
  %1331 = vmatprep.subr.mxu0 0.0
  %1332 = vmatpush1.msra.mxu0 0.0
  %1333 = vmatprep.subr.mxu0 0.0
  %1334 = vmatpush1.msra.mxu0 0.0
  %1335 = vmatprep.subr.mxu0 0.0
  %1336 = vmatpush1.msra.mxu0 0.0
  %1337 = vmatprep.mubr.f32.mxu0 0.0
  %v1338 = vand.u32 %v1097, 4294901760
  %v1339 = vsub.f32 %v1097, %v1338
  %1340 = vmatmul.mubr.f32.gmra.mrb[0].mxu0 %v1339
  %v1341 = vpop.f32.mrb[0].mxu0
  %v1342 = vadd.f32 %v1264, %v1341
  %v1343 = vpop.f32.mrb[0].mxu0
  %1344 = vdwg.mxu0
  %1345 = vmatprep.subr.mxu0 0.0
  %v1346 = vand.u32 %v1085, 4294901760
  %1347 = vmatpush1.msra.mxu0 %v1346
  %1348 = vmatprep.subr.mxu0 0.0
  %v1349 = vand.u32 %v1086, 4294901760
  %1350 = vmatpush1.msra.mxu0 %v1349
  %1351 = vmatprep.subr.mxu0 0.0
  %v1352 = vand.u32 %v1101, 4294901760
  %1353 = vmatpush1.msra.mxu0 %v1352
  %1354 = vmatprep.subr.mxu0 0.0
  %1355 = vmatpush1.msra.mxu0 0.0
  %1356 = vmatprep.subr.mxu0 0.0
  %1357 = vmatpush1.msra.mxu0 0.0
  %1358 = vmatprep.subr.mxu0 0.0
  %1359 = vmatpush1.msra.mxu0 0.0
  %1360 = vmatprep.subr.mxu0 0.0
  %1361 = vmatpush1.msra.mxu0 0.0
  %1362 = vmatprep.subr.mxu0 0.0
  %1363 = vmatpush1.msra.mxu0 0.0
  %1364 = vmatprep.subr.mxu0 0.0
  %1365 = vmatpush1.msra.mxu0 0.0
  %1366 = vmatprep.subr.mxu0 0.0
  %1367 = vmatpush1.msra.mxu0 0.0
  %1368 = vmatprep.subr.mxu0 0.0
  %1369 = vmatpush1.msra.mxu0 0.0
  %1370 = vmatprep.subr.mxu0 0.0
  %1371 = vmatpush1.msra.mxu0 0.0
  %1372 = vmatprep.subr.mxu0 0.0
  %1373 = vmatpush1.msra.mxu0 0.0
  %1374 = vmatprep.subr.mxu0 0.0
  %1375 = vmatpush1.msra.mxu0 0.0
  %1376 = vmatprep.subr.mxu0 0.0
  %1377 = vmatpush1.msra.mxu0 0.0
  %1378 = vmatprep.subr.mxu0 0.0
  %1379 = vmatpush1.msra.mxu0 0.0
  %1380 = vmatprep.subr.mxu0 0.0
  %1381 = vmatpush1.msra.mxu0 0.0
  %1382 = vmatprep.subr.mxu0 0.0
  %1383 = vmatpush1.msra.mxu0 0.0
  %1384 = vmatprep.subr.mxu0 0.0
  %1385 = vmatpush1.msra.mxu0 0.0
  %1386 = vmatprep.subr.mxu0 0.0
  %1387 = vmatpush1.msra.mxu0 0.0
  %1388 = vmatprep.subr.mxu0 0.0
  %1389 = vmatpush1.msra.mxu0 0.0
  %1390 = vmatprep.subr.mxu0 0.0
  %1391 = vmatpush1.msra.mxu0 0.0
  %1392 = vmatprep.subr.mxu0 0.0
  %1393 = vmatpush1.msra.mxu0 0.0
  %1394 = vmatprep.subr.mxu0 0.0
  %1395 = vmatpush1.msra.mxu0 0.0
  %1396 = vmatprep.subr.mxu0 0.0
  %1397 = vmatpush1.msra.mxu0 0.0
  %1398 = vmatprep.subr.mxu0 0.0
  %1399 = vmatpush1.msra.mxu0 0.0
  %1400 = vmatprep.subr.mxu0 0.0
  %1401 = vmatpush1.msra.mxu0 0.0
  %1402 = vmatprep.subr.mxu0 0.0
  %1403 = vmatpush1.msra.mxu0 0.0
  %1404 = vmatprep.subr.mxu0 0.0
  %1405 = vmatpush1.msra.mxu0 0.0
  %1406 = vmatprep.subr.mxu0 0.0
  %1407 = vmatpush1.msra.mxu0 0.0
  %1408 = vmatprep.subr.mxu0 0.0
  %1409 = vmatpush1.msra.mxu0 0.0
  %1410 = vmatprep.subr.mxu0 0.0
  %1411 = vmatpush1.msra.mxu0 0.0
  %1412 = vmatprep.mubr.f32.mxu0 0.0
  %v1413 = vand.u32 %v1097, 4294901760
  %v1414 = vsub.f32 %v1097, %v1413
  %v1415 = vand.u32 %v1414, 4294901760
  %1416 = vmatmul.mubr.f32.gmra.mrb[0].mxu0 %v1415
  %v1417 = vpop.f32.mrb[0].mxu0
  %v1418 = vadd.f32 %v1342, %v1417
  %v1419 = vpop.f32.mrb[0].mxu0
  %1420 = vdwg.mxu0
  %1421 = vmatprep.subr.mxu0 0.0
  %v1422 = vand.u32 %v1085, 4294901760
  %v1423 = vsub.f32 %v1085, %v1422
  %v1424 = vand.u32 %v1423, 4294901760
  %1425 = vmatpush1.msra.mxu0 %v1424
  %1426 = vmatprep.subr.mxu0 0.0
  %v1427 = vand.u32 %v1086, 4294901760
  %v1428 = vsub.f32 %v1086, %v1427
  %v1429 = vand.u32 %v1428, 4294901760
  %1430 = vmatpush1.msra.mxu0 %v1429
  %1431 = vmatprep.subr.mxu0 0.0
  %v1432 = vand.u32 %v1101, 4294901760
  %v1433 = vsub.f32 %v1101, %v1432
  %v1434 = vand.u32 %v1433, 4294901760
  %1435 = vmatpush1.msra.mxu0 %v1434
  %1436 = vmatprep.subr.mxu0 0.0
  %1437 = vmatpush1.msra.mxu0 0.0
  %1438 = vmatprep.subr.mxu0 0.0
  %1439 = vmatpush1.msra.mxu0 0.0
  %1440 = vmatprep.subr.mxu0 0.0
  %1441 = vmatpush1.msra.mxu0 0.0
  %1442 = vmatprep.subr.mxu0 0.0
  %1443 = vmatpush1.msra.mxu0 0.0
  %1444 = vmatprep.subr.mxu0 0.0
  %1445 = vmatpush1.msra.mxu0 0.0
  %1446 = vmatprep.subr.mxu0 0.0
  %1447 = vmatpush1.msra.mxu0 0.0
  %1448 = vmatprep.subr.mxu0 0.0
  %1449 = vmatpush1.msra.mxu0 0.0
  %1450 = vmatprep.subr.mxu0 0.0
  %1451 = vmatpush1.msra.mxu0 0.0
  %1452 = vmatprep.subr.mxu0 0.0
  %1453 = vmatpush1.msra.mxu0 0.0
  %1454 = vmatprep.subr.mxu0 0.0
  %1455 = vmatpush1.msra.mxu0 0.0
  %1456 = vmatprep.subr.mxu0 0.0
  %1457 = vmatpush1.msra.mxu0 0.0
  %1458 = vmatprep.subr.mxu0 0.0
  %1459 = vmatpush1.msra.mxu0 0.0
  %1460 = vmatprep.subr.mxu0 0.0
  %1461 = vmatpush1.msra.mxu0 0.0
  %1462 = vmatprep.subr.mxu0 0.0
  %1463 = vmatpush1.msra.mxu0 0.0
  %1464 = vmatprep.subr.mxu0 0.0
  %1465 = vmatpush1.msra.mxu0 0.0
  %1466 = vmatprep.subr.mxu0 0.0
  %1467 = vmatpush1.msra.mxu0 0.0
  %1468 = vmatprep.subr.mxu0 0.0
  %1469 = vmatpush1.msra.mxu0 0.0
  %1470 = vmatprep.subr.mxu0 0.0
  %1471 = vmatpush1.msra.mxu0 0.0
  %1472 = vmatprep.subr.mxu0 0.0
  %1473 = vmatpush1.msra.mxu0 0.0
  %1474 = vmatprep.subr.mxu0 0.0
  %1475 = vmatpush1.msra.mxu0 0.0
  %1476 = vmatprep.subr.mxu0 0.0
  %1477 = vmatpush1.msra.mxu0 0.0
  %1478 = vmatprep.subr.mxu0 0.0
  %1479 = vmatpush1.msra.mxu0 0.0
  %1480 = vmatprep.subr.mxu0 0.0
  %1481 = vmatpush1.msra.mxu0 0.0
  %1482 = vmatprep.subr.mxu0 0.0
  %1483 = vmatpush1.msra.mxu0 0.0
  %1484 = vmatprep.subr.mxu0 0.0
  %1485 = vmatpush1.msra.mxu0 0.0
  %1486 = vmatprep.subr.mxu0 0.0
  %1487 = vmatpush1.msra.mxu0 0.0
  %1488 = vmatprep.subr.mxu0 0.0
  %1489 = vmatpush1.msra.mxu0 0.0
  %1490 = vmatprep.subr.mxu0 0.0
  %1491 = vmatpush1.msra.mxu0 0.0
  %1492 = vmatprep.subr.mxu0 0.0
  %1493 = vmatpush1.msra.mxu0 0.0
  %1494 = vmatprep.mubr.f32.mxu0 0.0
  %v1495 = vand.u32 %v1097, 4294901760
  %1496 = vmatmul.mubr.f32.gmra.mrb[0].mxu0 %v1495
  %v1497 = vpop.f32.mrb[0].mxu0
  %v1498 = vadd.f32 %v1418, %v1497
  %v1499 = vpop.f32.mrb[0].mxu0
  %1500 = vdwg.mxu0
  %1501 = vmatprep.subr.mxu0 0.0
  %v1502 = vand.u32 %v1085, 4294901760
  %1503 = vmatpush1.msra.mxu0 %v1502
  %1504 = vmatprep.subr.mxu0 0.0
  %v1505 = vand.u32 %v1086, 4294901760
  %1506 = vmatpush1.msra.mxu0 %v1505
  %1507 = vmatprep.subr.mxu0 0.0
  %v1508 = vand.u32 %v1101, 4294901760
  %1509 = vmatpush1.msra.mxu0 %v1508
  %1510 = vmatprep.subr.mxu0 0.0
  %1511 = vmatpush1.msra.mxu0 0.0
  %1512 = vmatprep.subr.mxu0 0.0
  %1513 = vmatpush1.msra.mxu0 0.0
  %1514 = vmatprep.subr.mxu0 0.0
  %1515 = vmatpush1.msra.mxu0 0.0
  %1516 = vmatprep.subr.mxu0 0.0
  %1517 = vmatpush1.msra.mxu0 0.0
  %1518 = vmatprep.subr.mxu0 0.0
  %1519 = vmatpush1.msra.mxu0 0.0
  %1520 = vmatprep.subr.mxu0 0.0
  %1521 = vmatpush1.msra.mxu0 0.0
  %1522 = vmatprep.subr.mxu0 0.0
  %1523 = vmatpush1.msra.mxu0 0.0
  %1524 = vmatprep.subr.mxu0 0.0
  %1525 = vmatpush1.msra.mxu0 0.0
  %1526 = vmatprep.subr.mxu0 0.0
  %1527 = vmatpush1.msra.mxu0 0.0
  %1528 = vmatprep.subr.mxu0 0.0
  %1529 = vmatpush1.msra.mxu0 0.0
  %1530 = vmatprep.subr.mxu0 0.0
  %1531 = vmatpush1.msra.mxu0 0.0
  %1532 = vmatprep.subr.mxu0 0.0
  %1533 = vmatpush1.msra.mxu0 0.0
  %1534 = vmatprep.subr.mxu0 0.0
  %1535 = vmatpush1.msra.mxu0 0.0
  %1536 = vmatprep.subr.mxu0 0.0
  %1537 = vmatpush1.msra.mxu0 0.0
  %1538 = vmatprep.subr.mxu0 0.0
  %1539 = vmatpush1.msra.mxu0 0.0
  %1540 = vmatprep.subr.mxu0 0.0
  %1541 = vmatpush1.msra.mxu0 0.0
  %1542 = vmatprep.subr.mxu0 0.0
  %1543 = vmatpush1.msra.mxu0 0.0
  %1544 = vmatprep.subr.mxu0 0.0
  %1545 = vmatpush1.msra.mxu0 0.0
  %1546 = vmatprep.subr.mxu0 0.0
  %1547 = vmatpush1.msra.mxu0 0.0
  %1548 = vmatprep.subr.mxu0 0.0
  %1549 = vmatpush1.msra.mxu0 0.0
  %1550 = vmatprep.subr.mxu0 0.0
  %1551 = vmatpush1.msra.mxu0 0.0
  %1552 = vmatprep.subr.mxu0 0.0
  %1553 = vmatpush1.msra.mxu0 0.0
  %1554 = vmatprep.subr.mxu0 0.0
  %1555 = vmatpush1.msra.mxu0 0.0
  %1556 = vmatprep.subr.mxu0 0.0
  %1557 = vmatpush1.msra.mxu0 0.0
  %1558 = vmatprep.subr.mxu0 0.0
  %1559 = vmatpush1.msra.mxu0 0.0
  %1560 = vmatprep.subr.mxu0 0.0
  %1561 = vmatpush1.msra.mxu0 0.0
  %1562 = vmatprep.subr.mxu0 0.0
  %1563 = vmatpush1.msra.mxu0 0.0
  %1564 = vmatprep.subr.mxu0 0.0
  %1565 = vmatpush1.msra.mxu0 0.0
  %1566 = vmatprep.subr.mxu0 0.0
  %1567 = vmatpush1.msra.mxu0 0.0
  %1568 = vmatprep.mubr.f32.mxu0 0.0
  %v1569 = vand.u32 %v1097, 4294901760
  %1570 = vmatmul.mubr.f32.gmra.mrb[0].mxu0 %v1569
  %v1571 = vpop.f32.mrb[0].mxu0
  %v1572 = vadd.f32 %v1498, %v1571
  %v1573 = vpop.f32.mrb[0].mxu0
  %1574 = vdwg.mxu0
  %v1575 = vmul.f32 %v1572, 0.5
  %v1576 = vtanh.pop %v1575
  %v1577 = vmul.f32 %v1576, 0.5
  %v1578 = vadd.f32 %v1577, 0.5
  %vm1579 = vcmask 28672
  %1580 = vst.msk [vmem:[%s7] sm:$0x1f] %vm1579, %v1578
  // Predicated region
  $region30: #{tpu_custom_call.1} parent=0 // pred_check
    _
  $region31: #{tpu_custom_call.1} parent=0 // pred_check_branch
    %1582 = sbr.rel (0) target = $region33
  $region32: #{tpu_custom_call.1} parent=0 // pred_region
    _
  $region33: #{tpu_custom_call.1} parent=0 // pred_fallthru
    _
  // Predicated region
  $region34: #{tpu_custom_call.1} parent=0 // pred_check
    _
  $region35: #{tpu_custom_call.1} parent=0 // pred_check_branch
    %1584 = sbr.rel (0) target = $region37
  $region36: #{tpu_custom_call.1} parent=0 // pred_region
    _
  $region37: #{tpu_custom_call.1} parent=0 // pred_fallthru
    _

</llo_original>
